<compile_context>
chip_gen: v7x
topology: tpu7x:2x2x1
jax: 0.10.0
libtpu: 0.0.40
codegen_flags: <defaults>
</compile_context>

<pallas_src>
import jax
import jax.numpy as jnp
from jax import lax
from jax.experimental import pallas as pl
from jax.experimental.pallas import tpu as pltpu

NEG_RATE = 5      # negative_sample_rate from the module __init__
NUM_PARTS = 2     # leading "parallel" grid axis (2 TensorCores on v7x)
MAX_TILE = 2048   # upper bound on pair-columns handled per grid step


def _umap_loss_kernel(params_ref, dims_ref, idx_ref, to_ref, from_ref,
                      out_ref, acc_ref):
    """params: SMEM f32 [a, b];  dims: SMEM i32 [batch_size, n_valid].

    idx_ref : (2, TILE) int32  row indices into the original embeddings
    to_ref  : (D, B)    f32    embedding_to, transposed (VMEM-resident)
    from_ref: (D, B)    f32    embedding_from, transposed (VMEM-resident)
    out_ref : (8, 128)  f32    per-part partial sum (broadcast-filled)
    acc_ref : (1, 1)    f32    running partial sum for this part
    """
    c = pl.program_id(0)
    i = pl.program_id(1)
    steps = pl.num_programs(1)

    @pl.when(i == 0)
    def _():
        acc_ref[...] = jnp.zeros_like(acc_ref)

    a = params_ref[0]
    b = params_ref[1]
    bsz = dims_ref[0]
    n_valid = dims_ref[1]

    tile = idx_ref.shape[1]
    n_rows = to_ref.shape[1]

    # global pair-column ids for this tile (lane-dense int32 vector)
    col = (c * steps + i) * tile + lax.broadcasted_iota(jnp.int32, (1, tile), 1)

    # exact row gather via one-hot MXU matmul: (D, B) @ (B, TILE) -> (D, TILE)
    row_ids = lax.broadcasted_iota(jnp.int32, (n_rows, tile), 0)
    sel_to = (row_ids == idx_ref[0:1, :]).astype(jnp.float32)
    sel_from = (row_ids == idx_ref[1:2, :]).astype(jnp.float32)
    x_to = jnp.dot(to_ref[...], sel_to,
                   preferred_element_type=jnp.float32,
                   precision=lax.Precision.HIGHEST)
    x_from = jnp.dot(from_ref[...], sel_from,
                     preferred_element_type=jnp.float32,
                     precision=lax.Precision.HIGHEST)

    # squared L2 distance per pair, reduced over the sublane (feature) axis;
    # everything downstream is a lane-dense (1, TILE) vector.
    diff = x_to - x_from
    sumsq = jnp.sum(diff * diff, axis=0, keepdims=True)          # (1, TILE)

    # d**(2b) == (sumsq)**b, sqrt never needed; sumsq == 0 guarded exactly.
    pow_term = jnp.exp(b * jnp.log(jnp.maximum(sumsq, 1e-30)))
    pow_term = jnp.where(sumsq > 0.0, pow_term, 0.0)
    q = a * pow_term                                             # >= 0

    pg = (col < bsz).astype(jnp.float32)          # prob_graph: 1 pos, 0 neg
    valid = (col < n_valid).astype(jnp.float32)   # masks padded columns

    # attraction + repellant (repulsion_strength = 1) folds exactly to:
    #   CE = log(2 + q) - (1 - prob_graph) * log1p(q)
    ce = (jnp.log(2.0 + q) - (1.0 - pg) * jnp.log1p(q)) * valid

    acc_ref[...] += jnp.sum(ce, axis=1, keepdims=True)

    @pl.when(i == steps - 1)
    def _():
        out_ref[...] = jnp.broadcast_to(acc_ref[...], out_ref.shape)


def umap_loss(embedding_to, embedding_from, a, b, batch_size, *, key,
              negative_sample_rate=NEG_RATE):
    emb_to = embedding_to.astype(jnp.float32)
    emb_from = embedding_from.astype(jnp.float32)
    B, D = emb_to.shape
    nsr = negative_sample_rate
    n = B * (1 + nsr)

    # Negative-sampling glue (matches torch: repeat + randperm), expressed as
    # row indices into the ORIGINAL embeddings -- no (6B, D) copies in HBM.
    # TODO(synk): the randperm shuffle itself has no in-kernel equivalent; it
    # is generated host-side with jax.random and only its indices are fed in.
    perm = jax.random.permutation(key, B * nsr)
    pos = jnp.arange(B, dtype=jnp.int32)
    idx_to = jnp.concatenate([pos, jnp.tile(pos, nsr)])
    idx_from = jnp.concatenate([pos, (perm % B).astype(jnp.int32)])

    # Tile size: multiple of 128 (lane-dense), capped so the in-kernel one-hot
    # select matrices (2 * B * tile * 4 bytes) stay comfortably inside VMEM.
    tile_cap = max(128, min(MAX_TILE, ((1 << 20) // max(B, 1)) // 128 * 128))
    tile = max(128, min(tile_cap, pl.cdiv(n, 128) * 128))
    n_pad = pl.cdiv(n, NUM_PARTS * tile) * (NUM_PARTS * tile)
    steps = n_pad // (NUM_PARTS * tile)

    idx = jnp.stack([idx_to, idx_from], axis=0).astype(jnp.int32)
    idx = jnp.pad(idx, ((0, 0), (0, n_pad - n)))  # padded cols -> row 0 (masked)

    params = jnp.array([a, b], dtype=jnp.float32)
    dims = jnp.array([batch_size, n], dtype=jnp.int32)

    out = pl.pallas_call(
        _umap_loss_kernel,
        out_shape=jax.ShapeDtypeStruct((8, NUM_PARTS * 128), jnp.float32),
        grid_spec=pltpu.PrefetchScalarGridSpec(
            num_scalar_prefetch=2,
            grid=(NUM_PARTS, steps),
            in_specs=[
                pl.BlockSpec((2, tile), lambda c, i, p, d: (0, c * steps + i)),
                pl.BlockSpec((D, B), lambda c, i, p, d: (0, 0)),
                pl.BlockSpec((D, B), lambda c, i, p, d: (0, 0)),
            ],
            out_specs=pl.BlockSpec((8, 128), lambda c, i, p, d: (0, c)),
            scratch_shapes=[pltpu.VMEM((1, 1), jnp.float32)],
        ),
        compiler_params=pltpu.CompilerParams(
            dimension_semantics=("parallel", "arbitrary"),
            vmem_limit_bytes=32 * 1024 * 1024,
        ),
    )(params, dims, idx, emb_to.T, emb_from.T)

    # sum the NUM_PARTS partial sums, then mean over the n real pairs
    return jnp.sum(out[0, ::128]) / n


def umap_loss_ref(embedding_to, embedding_from, a, b, batch_size, *, key,
                  negative_sample_rate=NEG_RATE):
    """Pure-JAX reference mirroring the PyTorch forward (same permutation)."""
    emb_to = embedding_to.astype(jnp.float32)
    emb_from = embedding_from.astype(jnp.float32)
    neg_to = jnp.tile(emb_to, (negative_sample_rate, 1))
    rep_neg = jnp.tile(emb_from, (negative_sample_rate, 1))
    perm = jax.random.permutation(key, rep_neg.shape[0])
    neg_from = rep_neg[perm]
    dist = jnp.concatenate([
        jnp.linalg.norm(emb_to - emb_from, axis=1),
        jnp.linalg.norm(neg_to - neg_from, axis=1),
    ])
    prob_dist = -jnp.log1p(a * dist ** (2.0 * b))
    prob_graph = jnp.concatenate([
        jnp.ones((batch_size,), jnp.float32),
        jnp.zeros((batch_size * negative_sample_rate,), jnp.float32),
    ])
    log_sig = jax.nn.log_sigmoid(prob_dist)
    attraction = -prob_graph * log_sig
    repellant = -(1.0 - prob_graph) * (log_sig - prob_dist)
    return jnp.mean(attraction + repellant)


if __name__ == "__main__":
    key = jax.random.PRNGKey(0)
    k_to, k_from, k_perm = jax.random.split(key, 3)

    B, D = 8, 32
    a, b = 1.577, 0.895  # typical UMAP curve parameters

    embedding_to = jax.random.normal(k_to, (B, D), dtype=jnp.float32)
    embedding_from = jax.random.normal(k_from, (B, D), dtype=jnp.float32)

    loss = umap_loss(embedding_to, embedding_from, a, b, B, key=k_perm)
    loss = jax.block_until_ready(loss)

    ref = umap_loss_ref(embedding_to, embedding_from, a, b, B, key=k_perm)
    assert jnp.allclose(loss, ref, rtol=1e-4, atol=1e-5), (loss, ref)

    print("KERNEL_OK")
</pallas_src>

<mosaic_0001>
module attributes {stable_mosaic.version = 11 : i64} {
  func.func @_umap_loss_kernel(%arg0: i32, %arg1: i32, %arg2: memref<2xf32, #tpu.memory_space<smem>>, %arg3: memref<2xi32, #tpu.memory_space<smem>>, %arg4: memref<2x128xi32, #tpu.memory_space<vmem>>, %arg5: memref<32x8xf32, #tpu.memory_space<vmem>>, %arg6: memref<32x8xf32, #tpu.memory_space<vmem>>, %arg7: memref<8x128xf32, #tpu.memory_space<vmem>>, %arg8: memref<1x1xf32, #tpu.memory_space<vmem>>) attributes {dimension_semantics = [#tpu.dimension_semantics<parallel>, #tpu.dimension_semantics<arbitrary>], iteration_bounds = array<i64: 2, 1>, scalar_prefetch = 2 : i64, scratch_operands = 1 : i64, tpu.core_type = #tpu.core_type<tc>, window_params = [{transform_indices = @transform_0, window_bounds = array<i64: 2, 128>}, {pipeline_mode = #tpu.pipeline_mode<synchronous>, transform_indices = @transform_1, window_bounds = array<i64: 32, 8>}, {pipeline_mode = #tpu.pipeline_mode<synchronous>, transform_indices = @transform_2, window_bounds = array<i64: 32, 8>}, {transform_indices = @transform_3, window_bounds = array<i64: 8, 128>}]} {
    %c0_i32 = arith.constant 0 : i32
    %0 = arith.cmpi eq, %arg1, %c0_i32 : i32
    %1 = arith.extui %0 : i1 to i32
    %c0_i32_0 = arith.constant 0 : i32
    %2 = arith.cmpi ne, %1, %c0_i32_0 : i32
    scf.if %2 {
      %cst_25 = arith.constant 0.000000e+00 : f32
      %69 = vector.broadcast %cst_25 : f32 to vector<1x1xf32>
      %c0_26 = arith.constant 0 : index
      %c0_27 = arith.constant 0 : index
      %70 = vector.load %arg8[%c0_26, %c0_27] : memref<1x1xf32, #tpu.memory_space<vmem>>, vector<1x1xf32>
      tpu.vector_store %arg8[%c0_26, %c0_27], %69 {strides = array<i32>} : memref<1x1xf32, #tpu.memory_space<vmem>>, vector<1x1xf32>,
    } else {
    }
    %c0 = arith.constant 0 : index
    %3 = memref.load %arg2[%c0] : memref<2xf32, #tpu.memory_space<smem>>
    %c1 = arith.constant 1 : index
    %4 = memref.load %arg2[%c1] : memref<2xf32, #tpu.memory_space<smem>>
    %c0_1 = arith.constant 0 : index
    %5 = memref.load %arg3[%c0_1] : memref<2xi32, #tpu.memory_space<smem>>
    %c1_2 = arith.constant 1 : index
    %6 = memref.load %arg3[%c1_2] : memref<2xi32, #tpu.memory_space<smem>>
    %c1_i32 = arith.constant 1 : i32
    %7 = arith.muli %arg0, %c1_i32 : i32
    %8 = arith.addi %7, %arg1 : i32
    %c128_i32 = arith.constant 128 : i32
    %9 = arith.muli %8, %c128_i32 : i32
    %10 = tpu.iota {dimensions = array<i32: 1>} : vector<1x128xi32>
    %11 = vector.broadcast %9 : i32 to vector<1x128xi32>
    %12 = arith.addi %11, %10 : vector<1x128xi32>
    %13 = tpu.iota {dimensions = array<i32: 0>} : vector<8x128xi32>
    %c0_3 = arith.constant 0 : index
    %c0_4 = arith.constant 0 : index
    %14 = vector.load %arg4[%c0_3, %c0_4] : memref<2x128xi32, #tpu.memory_space<vmem>>, vector<1x128xi32>
    %15 = vector.broadcast %14 : vector<1x128xi32> to vector<8x128xi32>
    %16 = arith.cmpi eq, %13, %15 : vector<8x128xi32>
    %17 = arith.extui %16 : vector<8x128xi1> to vector<8x128xi32>
    %18 = arith.sitofp %17 : vector<8x128xi32> to vector<8x128xf32>
    %c1_5 = arith.constant 1 : index
    %c0_6 = arith.constant 0 : index
    %19 = vector.load %arg4[%c1_5, %c0_6] : memref<2x128xi32, #tpu.memory_space<vmem>>, vector<1x128xi32>
    %20 = vector.broadcast %19 : vector<1x128xi32> to vector<8x128xi32>
    %21 = arith.cmpi eq, %13, %20 : vector<8x128xi32>
    %22 = arith.extui %21 : vector<8x128xi1> to vector<8x128xi32>
    %23 = arith.sitofp %22 : vector<8x128xi32> to vector<8x128xf32>
    %c0_7 = arith.constant 0 : index
    %c0_8 = arith.constant 0 : index
    %24 = vector.load %arg5[%c0_7, %c0_8] : memref<32x8xf32, #tpu.memory_space<vmem>>, vector<32x8xf32>
    %cst = arith.constant dense<0.000000e+00> : vector<32x128xf32>
    %25 = tpu.matmul %24, %18, %cst {dimension_numbers = #tpu.dot_dimension_numbers<[1], [0], [0], [1], [0, 0, 1, 1], [], []>, precision = #tpu.contract_precision<fp32>} : vector<32x8xf32>, vector<8x128xf32>, vector<32x128xf32> -> vector<32x128xf32>
    %c0_9 = arith.constant 0 : index
    %c0_10 = arith.constant 0 : index
    %26 = vector.load %arg6[%c0_9, %c0_10] : memref<32x8xf32, #tpu.memory_space<vmem>>, vector<32x8xf32>
    %cst_11 = arith.constant dense<0.000000e+00> : vector<32x128xf32>
    %27 = tpu.matmul %26, %23, %cst_11 {dimension_numbers = #tpu.dot_dimension_numbers<[1], [0], [0], [1], [0, 0, 1, 1], [], []>, precision = #tpu.contract_precision<fp32>} : vector<32x8xf32>, vector<8x128xf32>, vector<32x128xf32> -> vector<32x128xf32>
    %28 = arith.subf %25, %27 : vector<32x128xf32>
    %29 = arith.mulf %28, %28 : vector<32x128xf32>
    %cst_12 = arith.constant dense<0.000000e+00> : vector<128xf32>
    %30 = vector.multi_reduction <add>, %29, %cst_12 [0] : vector<32x128xf32> to vector<128xf32>
    %31 = vector.shape_cast %30 : vector<128xf32> to vector<1x128xf32>
    %cst_13 = arith.constant 1.000000e-30 : f32
    %32 = vector.broadcast %cst_13 : f32 to vector<1x128xf32>
    %33 = arith.maximumf %31, %32 : vector<1x128xf32>
    %34 = math.log %33 : vector<1x128xf32>
    %35 = vector.broadcast %4 : f32 to vector<1x128xf32>
    %36 = arith.mulf %35, %34 : vector<1x128xf32>
    %37 = math.exp %36 : vector<1x128xf32>
    %cst_14 = arith.constant 0.000000e+00 : f32
    %38 = vector.broadcast %cst_14 : f32 to vector<1x128xf32>
    %39 = arith.cmpf ogt, %31, %38 : vector<1x128xf32>
    %cst_15 = arith.constant 0.000000e+00 : f32
    %40 = vector.broadcast %cst_15 : f32 to vector<1x128xf32>
    %41 = arith.select %39, %37, %40 : vector<1x128xi1>, vector<1x128xf32>
    %42 = vector.broadcast %3 : f32 to vector<1x128xf32>
    %43 = arith.mulf %42, %41 : vector<1x128xf32>
    %44 = vector.broadcast %5 : i32 to vector<1x128xi32>
    %45 = arith.cmpi slt, %12, %44 : vector<1x128xi32>
    %46 = arith.extui %45 : vector<1x128xi1> to vector<1x128xi32>
    %47 = arith.sitofp %46 : vector<1x128xi32> to vector<1x128xf32>
    %48 = vector.broadcast %6 : i32 to vector<1x128xi32>
    %49 = arith.cmpi slt, %12, %48 : vector<1x128xi32>
    %50 = arith.extui %49 : vector<1x128xi1> to vector<1x128xi32>
    %51 = arith.sitofp %50 : vector<1x128xi32> to vector<1x128xf32>
    %cst_16 = arith.constant 2.000000e+00 : f32
    %52 = vector.broadcast %cst_16 : f32 to vector<1x128xf32>
    %53 = arith.addf %52, %43 : vector<1x128xf32>
    %54 = math.log %53 : vector<1x128xf32>
    %cst_17 = arith.constant 1.000000e+00 : f32
    %55 = vector.broadcast %cst_17 : f32 to vector<1x128xf32>
    %56 = arith.subf %55, %47 : vector<1x128xf32>
    %57 = math.log1p %43 : vector<1x128xf32>
    %58 = arith.mulf %56, %57 : vector<1x128xf32>
    %59 = arith.subf %54, %58 : vector<1x128xf32>
    %60 = arith.mulf %59, %51 : vector<1x128xf32>
    %c0_18 = arith.constant 0 : index
    %c0_19 = arith.constant 0 : index
    %61 = vector.load %arg8[%c0_18, %c0_19] : memref<1x1xf32, #tpu.memory_space<vmem>>, vector<1x1xf32>
    %cst_20 = arith.constant dense<0.000000e+00> : vector<1xf32>
    %62 = vector.multi_reduction <add>, %60, %cst_20 [1] : vector<1x128xf32> to vector<1xf32>
    %63 = vector.shape_cast %62 : vector<1xf32> to vector<1x1xf32>
    %64 = arith.addf %61, %63 : vector<1x1xf32>
    %c0_21 = arith.constant 0 : index
    %c0_22 = arith.constant 0 : index
    %65 = vector.load %arg8[%c0_21, %c0_22] : memref<1x1xf32, #tpu.memory_space<vmem>>, vector<1x1xf32>
    tpu.vector_store %arg8[%c0_21, %c0_22], %64 {strides = array<i32>} : memref<1x1xf32, #tpu.memory_space<vmem>>, vector<1x1xf32>,
    %c0_i32_23 = arith.constant 0 : i32
    %66 = arith.cmpi eq, %arg1, %c0_i32_23 : i32
    %67 = arith.extui %66 : i1 to i32
    %c0_i32_24 = arith.constant 0 : i32
    %68 = arith.cmpi ne, %67, %c0_i32_24 : i32
    scf.if %68 {
      %c0_25 = arith.constant 0 : index
      %c0_26 = arith.constant 0 : index
      %69 = vector.load %arg8[%c0_25, %c0_26] : memref<1x1xf32, #tpu.memory_space<vmem>>, vector<1x1xf32>
      %70 = vector.shape_cast %69 : vector<1x1xf32> to vector<1x1xf32>
      %71 = vector.broadcast %70 : vector<1x1xf32> to vector<8x128xf32>
      %c0_27 = arith.constant 0 : index
      %c0_28 = arith.constant 0 : index
      %72 = vector.load %arg7[%c0_27, %c0_28] : memref<8x128xf32, #tpu.memory_space<vmem>>, vector<8x128xf32>
      tpu.vector_store %arg7[%c0_27, %c0_28], %71 {strides = array<i32>} : memref<8x128xf32, #tpu.memory_space<vmem>>, vector<8x128xf32>,
    } else {
    }
    return
  }
  func.func @transform_0(%arg0: i32, %arg1: i32, %arg2: memref<2xf32, #tpu.memory_space<smem>>, %arg3: memref<2xi32, #tpu.memory_space<smem>>) -> (i32, i32) {
    %c1_i32 = arith.constant 1 : i32
    %0 = arith.muli %arg0, %c1_i32 : i32
    %1 = arith.addi %0, %arg1 : i32
    %c0_i32 = arith.constant 0 : i32
    %c0_i32_0 = arith.constant 0 : i32
    return %c0_i32, %1 : i32, i32
  }
  func.func @transform_1(%arg0: i32, %arg1: i32, %arg2: memref<2xf32, #tpu.memory_space<smem>>, %arg3: memref<2xi32, #tpu.memory_space<smem>>) -> (i32, i32) {
    %c0_i32 = arith.constant 0 : i32
    %c0_i32_0 = arith.constant 0 : i32
    %c0_i32_1 = arith.constant 0 : i32
    return %c0_i32, %c0_i32_0 : i32, i32
  }
  func.func @transform_2(%arg0: i32, %arg1: i32, %arg2: memref<2xf32, #tpu.memory_space<smem>>, %arg3: memref<2xi32, #tpu.memory_space<smem>>) -> (i32, i32) {
    %c0_i32 = arith.constant 0 : i32
    %c0_i32_0 = arith.constant 0 : i32
    %c0_i32_1 = arith.constant 0 : i32
    return %c0_i32, %c0_i32_0 : i32, i32
  }
  func.func @transform_3(%arg0: i32, %arg1: i32, %arg2: memref<2xf32, #tpu.memory_space<smem>>, %arg3: memref<2xi32, #tpu.memory_space<smem>>) -> (i32, i32) {
    %c0_i32 = arith.constant 0 : i32
    %c0_i32_0 = arith.constant 0 : i32
    return %c0_i32, %arg0 : i32, i32
  }
}

</mosaic_0001>

<llo_original>
// kernel: tpu_custom_call.1
$region0: #{tpu_custom_call.1}
  #allocation0 [shape = 'u32[]', space=smem, size = 0x4, offset = 0x4, fixed_abs, tag = 'smem constant byte address 0x4 - core index']
  #allocation1 [shape = 'u32[144,128]{1,0:T(1,128)}', space=vmem, size = 0x12000, scoped, tag = 'internal scratch']
  #allocation2 [shape = 'f32[1,1]{1,0:T(1,128)}', space=vmem, size = 0x200, scoped, tag = 'scratch operand']
  #allocation3 [shape = 's32[1]{0}', space=sflag, size = 0x4, scoped, tag = 'scoped memory for tpu_custom_call.1']
  #allocation4 [shape = 'u8[512]{0}', space=smem, size = 0x200, scoped, tag = 'prefetched SMEM operand 0']
  #allocation5 [shape = 'u8[512]{0}', space=smem, size = 0x200, scoped, tag = 'prefetched SMEM operand 1']
  %s0 = inlined_call_operand.vmem [shape: f32[2], index: 0, kind: input, shape index: {}]
  %s1 = inlined_call_operand.vmem [shape: s32[2], index: 1, kind: input, shape index: {}]
  %s2 = inlined_call_operand.vmem [shape: s32[2,256], index: 2, kind: input, shape index: {}]
  %s3 = inlined_call_operand.vmem [shape: f32[32,8], index: 3, kind: input, shape index: {}]
  %s4 = inlined_call_operand.vmem [shape: f32[32,8], index: 4, kind: input, shape index: {}]
  %s5 = inlined_call_operand.hbm [shape: f32[8,256], index: 5, kind: output, shape index: {}]
  %s6 = sld [smem:[#allocation0]]
  $region53: #{tpu_custom_call.1} parent=0
    _
  %s8 = ssub.s32 1, %s6
  %s9 = scalar_select 0, %s8, %s6
  %s10 = sshll.u32 %s0, 4
  %s11 = int_to_ptr.vmem [resolvable:$true] %s10
  %13 = dma.vmem_to_smem %s11, 16, [#allocation4], [#allocation3]
  %s14 = sshll.u32 %s1, 4
  %s15 = int_to_ptr.vmem [resolvable:$true] %s14
  %17 = dma.vmem_to_smem %s15, 16, [#allocation5], [#allocation3]
  %18 = dma.done [#allocation3], 32
  %19 = sfence
  $region1: #{tpu_custom_call.1} parent=0
    #allocation6 [shape = 'u8[8192]{0}', space=vmem, size = 0x2000, scoped, tag = 'output window, operand 0']
    #allocation7 [shape = 's32[2]{0}', space=sflag, size = 0x8, scoped, tag = 'scoped memory for tpu_custom_call.1']
    %20 = vsyncpa [#allocation7], 0
    %s21 = scalar_lea.sflag [#allocation7], 1
    %22 = vsyncpa %s21, 0
    loop: start=0, step=1, limit=4
    $region2: #{tpu_custom_call.1} parent=1 // loop_pre_header
      _
    $region3: #{tpu_custom_call.1} parent=1 // loop_header
      %s24 = sphi 0, %s28
      %p25 = scmp.ge.s32.totalorder %s24, 4
      %s31 = sphi 0, %s43
      %s32 = sphi 0, %s39
      %s33 = sphi 0, %s31
      %s34 = sphi 0, %s32
      %s35 = sphi 0, %s33
      %s36 = sphi 0, %s34
      %s48 = sphi 0, %s50
      %s51 = sphi 0, %s48
      %s52 = sphi 0, %s51
      %s68 = sphi 0, %s52
      %s72 = sphi 0, %s72
      %s74 = sphi 0, %s72
      %s75 = sphi 0, %s74
      %s89 = sphi 0, %s75
      %s93 = sphi 0, %s93
      %s95 = sphi 0, %s93
      %s96 = sphi 0, %s95
      %s110 = sphi 0, %s96
      %s116 = sphi 0, %s118
      %s119 = sphi 0, %s116
      %s120 = sphi 0, %s119
      %s136 = sphi 0, %s120
    $region4: #{tpu_custom_call.1} parent=1 // loop_header_branch
      %27 = sbr.rel (%p25) target = $region8
    $region5: #{tpu_custom_call.1} parent=1 // loop_body
      %s29 = ssub.s32 %s24, 1
      %s30 = ssub.s32 %s24, 2
      %s37 = sadd.s32 1, %s32
      %p38 = scmp.ge.s32.totalorder %s37, 1
      %s39 = scalar_select %p38, 0, %s37
      %s40 = sadd.s32 1, %s31
      %s41 = scalar_select %p38, %s40, %s31
      %p42 = scmp.ge.s32.totalorder %s41, 2
      %s43 = scalar_select %p42, 0, %s41
      %s44 = sadd.s32 %s31, %s32
      %s45 = sadd.s32 %s43, %s39
      %s46 = ssub.s32 %s44, %s45
      %p47 = scmp.eq.s32.totalorder %s46, 0
      %s49 = sadd.s32 %s48, 1
      %s50 = scalar_select %p47, %s48, %s49
      %p53 = pneg %p47
      %p54 = scmp.eq.s32.totalorder %s24, 1
      %p55 = por %p53, %p54
      %p56 = scmp.ne.s32.totalorder %s48, %s51
      %p57 = scmp.eq.s32.totalorder %s24, 0
      %p58 = por %p56, %p57
      %p59 = scmp.ne.s32.totalorder %s48, %s51
      %p60 = scmp.eq.s32.totalorder %s29, 1
      %p61 = por %p59, %p60
      %p62 = scmp.ne.s32.totalorder %s51, %s52
      %p63 = scmp.eq.s32.totalorder %s29, 0
      %p64 = por %p62, %p63
      %p65 = scmp.ne.s32.totalorder %s51, %s52
      %p66 = scmp.eq.s32.totalorder %s30, 1
      %p67 = por %p65, %p66
      %p69 = scmp.ne.s32.totalorder %s52, %s68
      %p70 = scmp.eq.s32.totalorder %s30, 0
      %p71 = por %p69, %p70
      %s73 = sadd.s32 %s72, 1
      %p76 = scmp.eq.s32.totalorder %s24, 1
      %p77 = scmp.ne.s32.totalorder %s72, %s74
      %p78 = scmp.eq.s32.totalorder %s24, 0
      %p79 = por %p77, %p78
      %p80 = scmp.ne.s32.totalorder %s72, %s74
      %p81 = scmp.eq.s32.totalorder %s29, 1
      %p82 = por %p80, %p81
      %p83 = scmp.ne.s32.totalorder %s74, %s75
      %p84 = scmp.eq.s32.totalorder %s29, 0
      %p85 = por %p83, %p84
      %p86 = scmp.ne.s32.totalorder %s74, %s75
      %p87 = scmp.eq.s32.totalorder %s30, 1
      %p88 = por %p86, %p87
      %p90 = scmp.ne.s32.totalorder %s75, %s89
      %p91 = scmp.eq.s32.totalorder %s30, 0
      %p92 = por %p90, %p91
      %s94 = sadd.s32 %s93, 1
      %p97 = scmp.eq.s32.totalorder %s24, 1
      %p98 = scmp.ne.s32.totalorder %s93, %s95
      %p99 = scmp.eq.s32.totalorder %s24, 0
      %p100 = por %p98, %p99
      %p101 = scmp.ne.s32.totalorder %s93, %s95
      %p102 = scmp.eq.s32.totalorder %s29, 1
      %p103 = por %p101, %p102
      %p104 = scmp.ne.s32.totalorder %s95, %s96
      %p105 = scmp.eq.s32.totalorder %s29, 0
      %p106 = por %p104, %p105
      %p107 = scmp.ne.s32.totalorder %s95, %s96
      %p108 = scmp.eq.s32.totalorder %s30, 1
      %p109 = por %p107, %p108
      %p111 = scmp.ne.s32.totalorder %s96, %s110
      %p112 = scmp.eq.s32.totalorder %s30, 0
      %p113 = por %p111, %p112
      %s114 = ssub.s32 %s31, %s43
      %p115 = scmp.eq.s32.totalorder %s114, 0
      %s117 = sadd.s32 %s116, 1
      %s118 = scalar_select %p115, %s116, %s117
      %p121 = pneg %p115
      %p122 = scmp.eq.s32.totalorder %s24, 1
      %p123 = por %p121, %p122
      %p124 = scmp.ne.s32.totalorder %s116, %s119
      %p125 = scmp.eq.s32.totalorder %s24, 0
      %p126 = por %p124, %p125
      %p127 = scmp.ne.s32.totalorder %s116, %s119
      %p128 = scmp.eq.s32.totalorder %s29, 1
      %p129 = por %p127, %p128
      %p130 = scmp.ne.s32.totalorder %s119, %s120
      %p131 = scmp.eq.s32.totalorder %s29, 0
      %p132 = por %p130, %p131
      %p133 = scmp.ne.s32.totalorder %s119, %s120
      %p134 = scmp.eq.s32.totalorder %s30, 1
      %p135 = por %p133, %p134
      %p137 = scmp.ne.s32.totalorder %s120, %s136
      %p138 = scmp.eq.s32.totalorder %s30, 0
      %p139 = por %p137, %p138
      %p140 = scmp.le.s32.totalorder 1, %s24
      %p141 = scmp.lt.s32.totalorder %s24, 3
      %p142 = pnand %p140, %p141
      %p143 = pneg %p142
      // Predicated region
      $region9: #{tpu_custom_call.1} parent=5 // pred_check
        _
      $region10: #{tpu_custom_call.1} parent=5 // pred_check_branch
        %145 = sbr.rel (%p142) target = $region12
      $region11: #{tpu_custom_call.1} parent=5 // pred_region
        %s146 = ssub.s32 %s24, 1
        // Predicated region
        $region13: #{tpu_custom_call.1} parent=11 // pred_check
          %p147 = pneg %p85
        $region14: #{tpu_custom_call.1} parent=11 // pred_check_branch
          %149 = sbr.rel (%p147) target = $region16
        $region15: #{tpu_custom_call.1} parent=11 // pred_region
          _
        $region16: #{tpu_custom_call.1} parent=11 // pred_fallthru
          _
        // Predicated region
        $region17: #{tpu_custom_call.1} parent=11 // pred_check
          %p150 = pneg %p106
        $region18: #{tpu_custom_call.1} parent=11 // pred_check_branch
          %152 = sbr.rel (%p150) target = $region20
        $region19: #{tpu_custom_call.1} parent=11 // pred_region
          _
        $region20: #{tpu_custom_call.1} parent=11 // pred_fallthru
          _
      $region12: #{tpu_custom_call.1} parent=5 // pred_fallthru
        _
      %p153 = scmp.lt.s32.totalorder %s24, 2
      // Predicated region
      $region21: #{tpu_custom_call.1} parent=5 // pred_check
        %p154 = pneg %p153
      $region22: #{tpu_custom_call.1} parent=5 // pred_check_branch
        %156 = sbr.rel (%p154) target = $region24
      $region23: #{tpu_custom_call.1} parent=5 // pred_region
        // Predicated region
        $region25: #{tpu_custom_call.1} parent=23 // pred_check
          %p157 = pneg %p58
        $region26: #{tpu_custom_call.1} parent=23 // pred_check_branch
          %159 = sbr.rel (%p157) target = $region28
        $region27: #{tpu_custom_call.1} parent=23 // pred_region
          %s160 = sadd.s32 %s31, %s32
          %p161 = scmp.lt.s32.totalorder %s160, 1
          %s162 = scalar_select %p161, %s160, 1
          %s163 = smul.addr %s162, 2
          %s164 = scalar_lea.vmem %s2, %s163
          %s165 = sadd.s32 %s31, %s32
        $region28: #{tpu_custom_call.1} parent=23 // pred_fallthru
          _
      $region24: #{tpu_custom_call.1} parent=5 // pred_fallthru
        _
      %p166 = scmp.le.s32.totalorder 1, %s24
      %p167 = scmp.lt.s32.totalorder %s24, 3
      %p168 = pnand %p166, %p167
      %p169 = pneg %p168
      // Predicated region
      $region29: #{tpu_custom_call.1} parent=5 // pred_check
        _
      $region30: #{tpu_custom_call.1} parent=5 // pred_check_branch
        %171 = sbr.rel (%p168) target = $region32
      $region31: #{tpu_custom_call.1} parent=5 // pred_region
        %s172 = ssub.s32 %s24, 1
        %s173 = sadd.s32 %s33, %s34
        %p174 = scmp.lt.s32.totalorder %s173, 1
        %s175 = scalar_select %p174, %s173, 1
        %s176 = smul.addr %s175, 2
        %s177 = scalar_lea.vmem %s2, %s176
        %p178 = pneg %p64
        %p179 = pneg %p61
        %p180 = pneg %p85
        %p181 = pneg %p82
        %p182 = pneg %p106
        %p183 = pneg %p103
        %p184 = pneg %p132
        %p185 = pneg %p129
        %s186 = sand.u32 %s119, 1
        %s187 = scalar_lea.sflag [#allocation7], %s186
        %s188 = sand.u32 %s119, 1
        %s189 = smul.addr %s188, 8
        %s190 = scalar_lea.vmem [#allocation6], %s189
        %s191 = sadd.s32 %s33, %s34
        %p192 = scmp.lt.s32.totalorder %s191, 1
        %s193 = scalar_select %p192, %s191, 1
        %s194 = smul.addr %s193, 2
        %s195 = scalar_lea.vmem %s2, %s194
        %s196 = sadd.s32 %s33, %s34
        %p197 = scmp.eq.s32.totalorder %s34, 0
        // Predicated region
        $region33: #{tpu_custom_call.1} parent=31 // pred_check
          %p198 = pneg %p197
        $region34: #{tpu_custom_call.1} parent=31 // pred_check_branch
          %200 = sbr.rel (%p198) target = $region36
        $region35: #{tpu_custom_call.1} parent=31 // pred_region
          %vm201 = vcmask 0
          %202 = vst.msk [vmem:[#allocation2] sm:$0x1] %vm201, 0.0
        $region36: #{tpu_custom_call.1} parent=31 // pred_fallthru
          _
        %s203 = sld [smem:[#allocation4]]
        %s204 = sld [smem:[#allocation4 + $0x1]]
        %s205 = sld [smem:[#allocation5]]
        %s206 = sld [smem:[#allocation5 + $0x1]]
        %s207 = sadd.s32 %s33, %s34
        %s208 = smul.u32 %s207, 128
        %v209 = vlaneseq
        %v210 = vand.u32 %v209, 127
        %v211 = vstv %s208
        %v212 = vadd.s32 %v211, %v210
        %v213 = vlaneseq
        %v214 = vshrl.u32 %v213, 7
        %v215 = vld [vmem:[%s195] sm:$0x1]
        %v216 = vlaneseq
        %v217 = vshrl.u32 %v216, 7
        %v218 = vsub.s32 0, %v217
        %v219 = vrot.slane %v215, %v218
        %vm220 = vcmp.eq.s32.totalorder %v214, %v219
        %v221 = vsel %vm220, 1, 0
        %v222 = vcvt.s32.f32 %v221
        %v223 = vld [vmem:[%s195 + $0x1] sm:$0x1]
        %v224 = vlaneseq
        %v225 = vshrl.u32 %v224, 7
        %v226 = vsub.s32 0, %v225
        %v227 = vrot.slane %v223, %v226
        %vm228 = vcmp.eq.s32.totalorder %v214, %v227
        %v229 = vsel %vm228, 1, 0
        %v230 = vcvt.s32.f32 %v229
        %v231 = vld [vmem:[%s3] sm:$0xff]
        %v232 = vld [vmem:[%s3 + $0x8] sm:$0xff]
        %v233 = vld [vmem:[%s3 + $0x10] sm:$0xff]
        %v234 = vld [vmem:[%s3 + $0x18] sm:$0xff]
        %vm235 = vcmask 64512
        %v237 = vsel %vm235, %v231, 0
        %v240 = vsel %vm235, %v232, 0
        %v243 = vsel %vm235, %v233, 0
        %v246 = vsel %vm235, %v234, 0
        %248 = vmatprep.subr.mxu0 0.0
        %v249 = vand.u32 %v222, 4294901760
        %250 = vmatpush1.msra.mxu0 %v249
        %251 = vmatprep.subr.mxu0 0.0
        %252 = vmatpush1.msra.mxu0 0.0
        %253 = vmatprep.subr.mxu0 0.0
        %254 = vmatpush1.msra.mxu0 0.0
        %255 = vmatprep.subr.mxu0 0.0
        %256 = vmatpush1.msra.mxu0 0.0
        %257 = vmatprep.subr.mxu0 0.0
        %258 = vmatpush1.msra.mxu0 0.0
        %259 = vmatprep.subr.mxu0 0.0
        %260 = vmatpush1.msra.mxu0 0.0
        %261 = vmatprep.subr.mxu0 0.0
        %262 = vmatpush1.msra.mxu0 0.0
        %263 = vmatprep.subr.mxu0 0.0
        %264 = vmatpush1.msra.mxu0 0.0
        %265 = vmatprep.subr.mxu0 0.0
        %266 = vmatpush1.msra.mxu0 0.0
        %267 = vmatprep.subr.mxu0 0.0
        %268 = vmatpush1.msra.mxu0 0.0
        %269 = vmatprep.subr.mxu0 0.0
        %270 = vmatpush1.msra.mxu0 0.0
        %271 = vmatprep.subr.mxu0 0.0
        %272 = vmatpush1.msra.mxu0 0.0
        %273 = vmatprep.subr.mxu0 0.0
        %274 = vmatpush1.msra.mxu0 0.0
        %275 = vmatprep.subr.mxu0 0.0
        %276 = vmatpush1.msra.mxu0 0.0
        %277 = vmatprep.subr.mxu0 0.0
        %278 = vmatpush1.msra.mxu0 0.0
        %279 = vmatprep.subr.mxu0 0.0
        %280 = vmatpush1.msra.mxu0 0.0
        %281 = vmatprep.subr.mxu0 0.0
        %282 = vmatpush1.msra.mxu0 0.0
        %283 = vmatprep.subr.mxu0 0.0
        %284 = vmatpush1.msra.mxu0 0.0
        %285 = vmatprep.subr.mxu0 0.0
        %286 = vmatpush1.msra.mxu0 0.0
        %287 = vmatprep.subr.mxu0 0.0
        %288 = vmatpush1.msra.mxu0 0.0
        %289 = vmatprep.subr.mxu0 0.0
        %290 = vmatpush1.msra.mxu0 0.0
        %291 = vmatprep.subr.mxu0 0.0
        %292 = vmatpush1.msra.mxu0 0.0
        %293 = vmatprep.subr.mxu0 0.0
        %294 = vmatpush1.msra.mxu0 0.0
        %295 = vmatprep.subr.mxu0 0.0
        %296 = vmatpush1.msra.mxu0 0.0
        %297 = vmatprep.subr.mxu0 0.0
        %298 = vmatpush1.msra.mxu0 0.0
        %299 = vmatprep.subr.mxu0 0.0
        %300 = vmatpush1.msra.mxu0 0.0
        %301 = vmatprep.subr.mxu0 0.0
        %302 = vmatpush1.msra.mxu0 0.0
        %303 = vmatprep.subr.mxu0 0.0
        %304 = vmatpush1.msra.mxu0 0.0
        %305 = vmatprep.subr.mxu0 0.0
        %306 = vmatpush1.msra.mxu0 0.0
        %307 = vmatprep.subr.mxu0 0.0
        %308 = vmatpush1.msra.mxu0 0.0
        %309 = vmatprep.subr.mxu0 0.0
        %310 = vmatpush1.msra.mxu0 0.0
        %311 = vmatprep.subr.mxu0 0.0
        %312 = vmatpush1.msra.mxu0 0.0
        %313 = vmatprep.mubr.f32.mxu0 0.0
        %v314 = vand.u32 %v237, 4294901760
        %v315 = vsub.f32 %v237, %v314
        %v316 = vand.u32 %v315, 4294901760
        %v317 = vsub.f32 %v315, %v316
        %v318 = vand.u32 %v317, 4294901760
        %319 = vmatmul.mubr.f32.gmra.mrb[0].mxu0 %v318
        %v320 = vpop.f32.mrb[0].mxu0
        %v321 = vadd.f32 0.0, %v320
        %v322 = vpop.f32.mrb[0].mxu0
        %323 = vmatprep.mubr.f32.mxu0 0.0
        %v324 = vand.u32 %v240, 4294901760
        %v325 = vsub.f32 %v240, %v324
        %v326 = vand.u32 %v325, 4294901760
        %v327 = vsub.f32 %v325, %v326
        %v328 = vand.u32 %v327, 4294901760
        %329 = vmatmul.mubr.f32.gmra.mrb[0].mxu0 %v328
        %v330 = vpop.f32.mrb[0].mxu0
        %v331 = vadd.f32 0.0, %v330
        %v332 = vpop.f32.mrb[0].mxu0
        %333 = vmatprep.mubr.f32.mxu0 0.0
        %v334 = vand.u32 %v243, 4294901760
        %v335 = vsub.f32 %v243, %v334
        %v336 = vand.u32 %v335, 4294901760
        %v337 = vsub.f32 %v335, %v336
        %v338 = vand.u32 %v337, 4294901760
        %339 = vmatmul.mubr.f32.gmra.mrb[0].mxu0 %v338
        %v340 = vpop.f32.mrb[0].mxu0
        %v341 = vadd.f32 0.0, %v340
        %v342 = vpop.f32.mrb[0].mxu0
        %343 = vmatprep.mubr.f32.mxu0 0.0
        %v344 = vand.u32 %v246, 4294901760
        %v345 = vsub.f32 %v246, %v344
        %v346 = vand.u32 %v345, 4294901760
        %v347 = vsub.f32 %v345, %v346
        %v348 = vand.u32 %v347, 4294901760
        %349 = vmatmul.mubr.f32.gmra.mrb[0].mxu0 %v348
        %v350 = vpop.f32.mrb[0].mxu0
        %v351 = vadd.f32 0.0, %v350
        %v352 = vpop.f32.mrb[0].mxu0
        %353 = vdwg.mxu0
        %354 = vmatprep.subr.mxu0 0.0
        %v355 = vand.u32 %v222, 4294901760
        %v356 = vsub.f32 %v222, %v355
        %v357 = vand.u32 %v356, 4294901760
        %v358 = vsub.f32 %v356, %v357
        %v359 = vand.u32 %v358, 4294901760
        %360 = vmatpush1.msra.mxu0 %v359
        %361 = vmatprep.subr.mxu0 0.0
        %362 = vmatpush1.msra.mxu0 0.0
        %363 = vmatprep.subr.mxu0 0.0
        %364 = vmatpush1.msra.mxu0 0.0
        %365 = vmatprep.subr.mxu0 0.0
        %366 = vmatpush1.msra.mxu0 0.0
        %367 = vmatprep.subr.mxu0 0.0
        %368 = vmatpush1.msra.mxu0 0.0
        %369 = vmatprep.subr.mxu0 0.0
        %370 = vmatpush1.msra.mxu0 0.0
        %371 = vmatprep.subr.mxu0 0.0
        %372 = vmatpush1.msra.mxu0 0.0
        %373 = vmatprep.subr.mxu0 0.0
        %374 = vmatpush1.msra.mxu0 0.0
        %375 = vmatprep.subr.mxu0 0.0
        %376 = vmatpush1.msra.mxu0 0.0
        %377 = vmatprep.subr.mxu0 0.0
        %378 = vmatpush1.msra.mxu0 0.0
        %379 = vmatprep.subr.mxu0 0.0
        %380 = vmatpush1.msra.mxu0 0.0
        %381 = vmatprep.subr.mxu0 0.0
        %382 = vmatpush1.msra.mxu0 0.0
        %383 = vmatprep.subr.mxu0 0.0
        %384 = vmatpush1.msra.mxu0 0.0
        %385 = vmatprep.subr.mxu0 0.0
        %386 = vmatpush1.msra.mxu0 0.0
        %387 = vmatprep.subr.mxu0 0.0
        %388 = vmatpush1.msra.mxu0 0.0
        %389 = vmatprep.subr.mxu0 0.0
        %390 = vmatpush1.msra.mxu0 0.0
        %391 = vmatprep.subr.mxu0 0.0
        %392 = vmatpush1.msra.mxu0 0.0
        %393 = vmatprep.subr.mxu0 0.0
        %394 = vmatpush1.msra.mxu0 0.0
        %395 = vmatprep.subr.mxu0 0.0
        %396 = vmatpush1.msra.mxu0 0.0
        %397 = vmatprep.subr.mxu0 0.0
        %398 = vmatpush1.msra.mxu0 0.0
        %399 = vmatprep.subr.mxu0 0.0
        %400 = vmatpush1.msra.mxu0 0.0
        %401 = vmatprep.subr.mxu0 0.0
        %402 = vmatpush1.msra.mxu0 0.0
        %403 = vmatprep.subr.mxu0 0.0
        %404 = vmatpush1.msra.mxu0 0.0
        %405 = vmatprep.subr.mxu0 0.0
        %406 = vmatpush1.msra.mxu0 0.0
        %407 = vmatprep.subr.mxu0 0.0
        %408 = vmatpush1.msra.mxu0 0.0
        %409 = vmatprep.subr.mxu0 0.0
        %410 = vmatpush1.msra.mxu0 0.0
        %411 = vmatprep.subr.mxu0 0.0
        %412 = vmatpush1.msra.mxu0 0.0
        %413 = vmatprep.subr.mxu0 0.0
        %414 = vmatpush1.msra.mxu0 0.0
        %415 = vmatprep.subr.mxu0 0.0
        %416 = vmatpush1.msra.mxu0 0.0
        %417 = vmatprep.subr.mxu0 0.0
        %418 = vmatpush1.msra.mxu0 0.0
        %419 = vmatprep.subr.mxu0 0.0
        %420 = vmatpush1.msra.mxu0 0.0
        %421 = vmatprep.subr.mxu0 0.0
        %422 = vmatpush1.msra.mxu0 0.0
        %423 = vmatprep.mubr.f32.mxu0 0.0
        %v424 = vand.u32 %v237, 4294901760
        %425 = vmatmul.mubr.f32.gmra.mrb[0].mxu0 %v424
        %v426 = vpop.f32.mrb[0].mxu0
        %v427 = vadd.f32 %v321, %v426
        %v428 = vpop.f32.mrb[0].mxu0
        %429 = vmatprep.mubr.f32.mxu0 0.0
        %v430 = vand.u32 %v240, 4294901760
        %431 = vmatmul.mubr.f32.gmra.mrb[0].mxu0 %v430
        %v432 = vpop.f32.mrb[0].mxu0
        %v433 = vadd.f32 %v331, %v432
        %v434 = vpop.f32.mrb[0].mxu0
        %435 = vmatprep.mubr.f32.mxu0 0.0
        %v436 = vand.u32 %v243, 4294901760
        %437 = vmatmul.mubr.f32.gmra.mrb[0].mxu0 %v436
        %v438 = vpop.f32.mrb[0].mxu0
        %v439 = vadd.f32 %v341, %v438
        %v440 = vpop.f32.mrb[0].mxu0
        %441 = vmatprep.mubr.f32.mxu0 0.0
        %v442 = vand.u32 %v246, 4294901760
        %443 = vmatmul.mubr.f32.gmra.mrb[0].mxu0 %v442
        %v444 = vpop.f32.mrb[0].mxu0
        %v445 = vadd.f32 %v351, %v444
        %v446 = vpop.f32.mrb[0].mxu0
        %447 = vdwg.mxu0
        %448 = vmatprep.subr.mxu0 0.0
        %v449 = vand.u32 %v222, 4294901760
        %v450 = vsub.f32 %v222, %v449
        %451 = vmatpush1.msra.mxu0 %v450
        %452 = vmatprep.subr.mxu0 0.0
        %453 = vmatpush1.msra.mxu0 0.0
        %454 = vmatprep.subr.mxu0 0.0
        %455 = vmatpush1.msra.mxu0 0.0
        %456 = vmatprep.subr.mxu0 0.0
        %457 = vmatpush1.msra.mxu0 0.0
        %458 = vmatprep.subr.mxu0 0.0
        %459 = vmatpush1.msra.mxu0 0.0
        %460 = vmatprep.subr.mxu0 0.0
        %461 = vmatpush1.msra.mxu0 0.0
        %462 = vmatprep.subr.mxu0 0.0
        %463 = vmatpush1.msra.mxu0 0.0
        %464 = vmatprep.subr.mxu0 0.0
        %465 = vmatpush1.msra.mxu0 0.0
        %466 = vmatprep.subr.mxu0 0.0
        %467 = vmatpush1.msra.mxu0 0.0
        %468 = vmatprep.subr.mxu0 0.0
        %469 = vmatpush1.msra.mxu0 0.0
        %470 = vmatprep.subr.mxu0 0.0
        %471 = vmatpush1.msra.mxu0 0.0
        %472 = vmatprep.subr.mxu0 0.0
        %473 = vmatpush1.msra.mxu0 0.0
        %474 = vmatprep.subr.mxu0 0.0
        %475 = vmatpush1.msra.mxu0 0.0
        %476 = vmatprep.subr.mxu0 0.0
        %477 = vmatpush1.msra.mxu0 0.0
        %478 = vmatprep.subr.mxu0 0.0
        %479 = vmatpush1.msra.mxu0 0.0
        %480 = vmatprep.subr.mxu0 0.0
        %481 = vmatpush1.msra.mxu0 0.0
        %482 = vmatprep.subr.mxu0 0.0
        %483 = vmatpush1.msra.mxu0 0.0
        %484 = vmatprep.subr.mxu0 0.0
        %485 = vmatpush1.msra.mxu0 0.0
        %486 = vmatprep.subr.mxu0 0.0
        %487 = vmatpush1.msra.mxu0 0.0
        %488 = vmatprep.subr.mxu0 0.0
        %489 = vmatpush1.msra.mxu0 0.0
        %490 = vmatprep.subr.mxu0 0.0
        %491 = vmatpush1.msra.mxu0 0.0
        %492 = vmatprep.subr.mxu0 0.0
        %493 = vmatpush1.msra.mxu0 0.0
        %494 = vmatprep.subr.mxu0 0.0
        %495 = vmatpush1.msra.mxu0 0.0
        %496 = vmatprep.subr.mxu0 0.0
        %497 = vmatpush1.msra.mxu0 0.0
        %498 = vmatprep.subr.mxu0 0.0
        %499 = vmatpush1.msra.mxu0 0.0
        %500 = vmatprep.subr.mxu0 0.0
        %501 = vmatpush1.msra.mxu0 0.0
        %502 = vmatprep.subr.mxu0 0.0
        %503 = vmatpush1.msra.mxu0 0.0
        %504 = vmatprep.subr.mxu0 0.0
        %505 = vmatpush1.msra.mxu0 0.0
        %506 = vmatprep.subr.mxu0 0.0
        %507 = vmatpush1.msra.mxu0 0.0
        %508 = vmatprep.subr.mxu0 0.0
        %509 = vmatpush1.msra.mxu0 0.0
        %510 = vmatprep.subr.mxu0 0.0
        %511 = vmatpush1.msra.mxu0 0.0
        %512 = vmatprep.subr.mxu0 0.0
        %513 = vmatpush1.msra.mxu0 0.0
        %514 = vmatprep.mubr.f32.mxu0 0.0
        %v515 = vand.u32 %v237, 4294901760
        %v516 = vsub.f32 %v237, %v515
        %517 = vmatmul.mubr.f32.gmra.mrb[0].mxu0 %v516
        %v518 = vpop.f32.mrb[0].mxu0
        %v519 = vadd.f32 %v427, %v518
        %v520 = vpop.f32.mrb[0].mxu0
        %521 = vmatprep.mubr.f32.mxu0 0.0
        %v522 = vand.u32 %v240, 4294901760
        %v523 = vsub.f32 %v240, %v522
        %524 = vmatmul.mubr.f32.gmra.mrb[0].mxu0 %v523
        %v525 = vpop.f32.mrb[0].mxu0
        %v526 = vadd.f32 %v433, %v525
        %v527 = vpop.f32.mrb[0].mxu0
        %528 = vmatprep.mubr.f32.mxu0 0.0
        %v529 = vand.u32 %v243, 4294901760
        %v530 = vsub.f32 %v243, %v529
        %531 = vmatmul.mubr.f32.gmra.mrb[0].mxu0 %v530
        %v532 = vpop.f32.mrb[0].mxu0
        %v533 = vadd.f32 %v439, %v532
        %v534 = vpop.f32.mrb[0].mxu0
        %535 = vmatprep.mubr.f32.mxu0 0.0
        %v536 = vand.u32 %v246, 4294901760
        %v537 = vsub.f32 %v246, %v536
        %538 = vmatmul.mubr.f32.gmra.mrb[0].mxu0 %v537
        %v539 = vpop.f32.mrb[0].mxu0
        %v540 = vadd.f32 %v445, %v539
        %v541 = vpop.f32.mrb[0].mxu0
        %542 = vdwg.mxu0
        %543 = vmatprep.subr.mxu0 0.0
        %v544 = vand.u32 %v222, 4294901760
        %545 = vmatpush1.msra.mxu0 %v544
        %546 = vmatprep.subr.mxu0 0.0
        %547 = vmatpush1.msra.mxu0 0.0
        %548 = vmatprep.subr.mxu0 0.0
        %549 = vmatpush1.msra.mxu0 0.0
        %550 = vmatprep.subr.mxu0 0.0
        %551 = vmatpush1.msra.mxu0 0.0
        %552 = vmatprep.subr.mxu0 0.0
        %553 = vmatpush1.msra.mxu0 0.0
        %554 = vmatprep.subr.mxu0 0.0
        %555 = vmatpush1.msra.mxu0 0.0
        %556 = vmatprep.subr.mxu0 0.0
        %557 = vmatpush1.msra.mxu0 0.0
        %558 = vmatprep.subr.mxu0 0.0
        %559 = vmatpush1.msra.mxu0 0.0
        %560 = vmatprep.subr.mxu0 0.0
        %561 = vmatpush1.msra.mxu0 0.0
        %562 = vmatprep.subr.mxu0 0.0
        %563 = vmatpush1.msra.mxu0 0.0
        %564 = vmatprep.subr.mxu0 0.0
        %565 = vmatpush1.msra.mxu0 0.0
        %566 = vmatprep.subr.mxu0 0.0
        %567 = vmatpush1.msra.mxu0 0.0
        %568 = vmatprep.subr.mxu0 0.0
        %569 = vmatpush1.msra.mxu0 0.0
        %570 = vmatprep.subr.mxu0 0.0
        %571 = vmatpush1.msra.mxu0 0.0
        %572 = vmatprep.subr.mxu0 0.0
        %573 = vmatpush1.msra.mxu0 0.0
        %574 = vmatprep.subr.mxu0 0.0
        %575 = vmatpush1.msra.mxu0 0.0
        %576 = vmatprep.subr.mxu0 0.0
        %577 = vmatpush1.msra.mxu0 0.0
        %578 = vmatprep.subr.mxu0 0.0
        %579 = vmatpush1.msra.mxu0 0.0
        %580 = vmatprep.subr.mxu0 0.0
        %581 = vmatpush1.msra.mxu0 0.0
        %582 = vmatprep.subr.mxu0 0.0
        %583 = vmatpush1.msra.mxu0 0.0
        %584 = vmatprep.subr.mxu0 0.0
        %585 = vmatpush1.msra.mxu0 0.0
        %586 = vmatprep.subr.mxu0 0.0
        %587 = vmatpush1.msra.mxu0 0.0
        %588 = vmatprep.subr.mxu0 0.0
        %589 = vmatpush1.msra.mxu0 0.0
        %590 = vmatprep.subr.mxu0 0.0
        %591 = vmatpush1.msra.mxu0 0.0
        %592 = vmatprep.subr.mxu0 0.0
        %593 = vmatpush1.msra.mxu0 0.0
        %594 = vmatprep.subr.mxu0 0.0
        %595 = vmatpush1.msra.mxu0 0.0
        %596 = vmatprep.subr.mxu0 0.0
        %597 = vmatpush1.msra.mxu0 0.0
        %598 = vmatprep.subr.mxu0 0.0
        %599 = vmatpush1.msra.mxu0 0.0
        %600 = vmatprep.subr.mxu0 0.0
        %601 = vmatpush1.msra.mxu0 0.0
        %602 = vmatprep.subr.mxu0 0.0
        %603 = vmatpush1.msra.mxu0 0.0
        %604 = vmatprep.subr.mxu0 0.0
        %605 = vmatpush1.msra.mxu0 0.0
        %606 = vmatprep.subr.mxu0 0.0
        %607 = vmatpush1.msra.mxu0 0.0
        %608 = vmatprep.mubr.f32.mxu0 0.0
        %v609 = vand.u32 %v237, 4294901760
        %v610 = vsub.f32 %v237, %v609
        %v611 = vand.u32 %v610, 4294901760
        %612 = vmatmul.mubr.f32.gmra.mrb[0].mxu0 %v611
        %v613 = vpop.f32.mrb[0].mxu0
        %v614 = vadd.f32 %v519, %v613
        %v615 = vpop.f32.mrb[0].mxu0
        %616 = vmatprep.mubr.f32.mxu0 0.0
        %v617 = vand.u32 %v240, 4294901760
        %v618 = vsub.f32 %v240, %v617
        %v619 = vand.u32 %v618, 4294901760
        %620 = vmatmul.mubr.f32.gmra.mrb[0].mxu0 %v619
        %v621 = vpop.f32.mrb[0].mxu0
        %v622 = vadd.f32 %v526, %v621
        %v623 = vpop.f32.mrb[0].mxu0
        %624 = vmatprep.mubr.f32.mxu0 0.0
        %v625 = vand.u32 %v243, 4294901760
        %v626 = vsub.f32 %v243, %v625
        %v627 = vand.u32 %v626, 4294901760
        %628 = vmatmul.mubr.f32.gmra.mrb[0].mxu0 %v627
        %v629 = vpop.f32.mrb[0].mxu0
        %v630 = vadd.f32 %v533, %v629
        %v631 = vpop.f32.mrb[0].mxu0
        %632 = vmatprep.mubr.f32.mxu0 0.0
        %v633 = vand.u32 %v246, 4294901760
        %v634 = vsub.f32 %v246, %v633
        %v635 = vand.u32 %v634, 4294901760
        %636 = vmatmul.mubr.f32.gmra.mrb[0].mxu0 %v635
        %v637 = vpop.f32.mrb[0].mxu0
        %v638 = vadd.f32 %v540, %v637
        %v639 = vpop.f32.mrb[0].mxu0
        %640 = vdwg.mxu0
        %641 = vmatprep.subr.mxu0 0.0
        %v642 = vand.u32 %v222, 4294901760
        %v643 = vsub.f32 %v222, %v642
        %v644 = vand.u32 %v643, 4294901760
        %645 = vmatpush1.msra.mxu0 %v644
        %646 = vmatprep.subr.mxu0 0.0
        %647 = vmatpush1.msra.mxu0 0.0
        %648 = vmatprep.subr.mxu0 0.0
        %649 = vmatpush1.msra.mxu0 0.0
        %650 = vmatprep.subr.mxu0 0.0
        %651 = vmatpush1.msra.mxu0 0.0
        %652 = vmatprep.subr.mxu0 0.0
        %653 = vmatpush1.msra.mxu0 0.0
        %654 = vmatprep.subr.mxu0 0.0
        %655 = vmatpush1.msra.mxu0 0.0
        %656 = vmatprep.subr.mxu0 0.0
        %657 = vmatpush1.msra.mxu0 0.0
        %658 = vmatprep.subr.mxu0 0.0
        %659 = vmatpush1.msra.mxu0 0.0
        %660 = vmatprep.subr.mxu0 0.0
        %661 = vmatpush1.msra.mxu0 0.0
        %662 = vmatprep.subr.mxu0 0.0
        %663 = vmatpush1.msra.mxu0 0.0
        %664 = vmatprep.subr.mxu0 0.0
        %665 = vmatpush1.msra.mxu0 0.0
        %666 = vmatprep.subr.mxu0 0.0
        %667 = vmatpush1.msra.mxu0 0.0
        %668 = vmatprep.subr.mxu0 0.0
        %669 = vmatpush1.msra.mxu0 0.0
        %670 = vmatprep.subr.mxu0 0.0
        %671 = vmatpush1.msra.mxu0 0.0
        %672 = vmatprep.subr.mxu0 0.0
        %673 = vmatpush1.msra.mxu0 0.0
        %674 = vmatprep.subr.mxu0 0.0
        %675 = vmatpush1.msra.mxu0 0.0
        %676 = vmatprep.subr.mxu0 0.0
        %677 = vmatpush1.msra.mxu0 0.0
        %678 = vmatprep.subr.mxu0 0.0
        %679 = vmatpush1.msra.mxu0 0.0
        %680 = vmatprep.subr.mxu0 0.0
        %681 = vmatpush1.msra.mxu0 0.0
        %682 = vmatprep.subr.mxu0 0.0
        %683 = vmatpush1.msra.mxu0 0.0
        %684 = vmatprep.subr.mxu0 0.0
        %685 = vmatpush1.msra.mxu0 0.0
        %686 = vmatprep.subr.mxu0 0.0
        %687 = vmatpush1.msra.mxu0 0.0
        %688 = vmatprep.subr.mxu0 0.0
        %689 = vmatpush1.msra.mxu0 0.0
        %690 = vmatprep.subr.mxu0 0.0
        %691 = vmatpush1.msra.mxu0 0.0
        %692 = vmatprep.subr.mxu0 0.0
        %693 = vmatpush1.msra.mxu0 0.0
        %694 = vmatprep.subr.mxu0 0.0
        %695 = vmatpush1.msra.mxu0 0.0
        %696 = vmatprep.subr.mxu0 0.0
        %697 = vmatpush1.msra.mxu0 0.0
        %698 = vmatprep.subr.mxu0 0.0
        %699 = vmatpush1.msra.mxu0 0.0
        %700 = vmatprep.subr.mxu0 0.0
        %701 = vmatpush1.msra.mxu0 0.0
        %702 = vmatprep.subr.mxu0 0.0
        %703 = vmatpush1.msra.mxu0 0.0
        %704 = vmatprep.subr.mxu0 0.0
        %705 = vmatpush1.msra.mxu0 0.0
        %706 = vmatprep.subr.mxu0 0.0
        %707 = vmatpush1.msra.mxu0 0.0
        %708 = vmatprep.mubr.f32.mxu0 0.0
        %v709 = vand.u32 %v237, 4294901760
        %710 = vmatmul.mubr.f32.gmra.mrb[0].mxu0 %v709
        %v711 = vpop.f32.mrb[0].mxu0
        %v712 = vadd.f32 %v614, %v711
        %v713 = vpop.f32.mrb[0].mxu0
        %714 = vmatprep.mubr.f32.mxu0 0.0
        %v715 = vand.u32 %v240, 4294901760
        %716 = vmatmul.mubr.f32.gmra.mrb[0].mxu0 %v715
        %v717 = vpop.f32.mrb[0].mxu0
        %v718 = vadd.f32 %v622, %v717
        %v719 = vpop.f32.mrb[0].mxu0
        %720 = vmatprep.mubr.f32.mxu0 0.0
        %v721 = vand.u32 %v243, 4294901760
        %722 = vmatmul.mubr.f32.gmra.mrb[0].mxu0 %v721
        %v723 = vpop.f32.mrb[0].mxu0
        %v724 = vadd.f32 %v630, %v723
        %v725 = vpop.f32.mrb[0].mxu0
        %726 = vmatprep.mubr.f32.mxu0 0.0
        %v727 = vand.u32 %v246, 4294901760
        %728 = vmatmul.mubr.f32.gmra.mrb[0].mxu0 %v727
        %v729 = vpop.f32.mrb[0].mxu0
        %v730 = vadd.f32 %v638, %v729
        %v731 = vpop.f32.mrb[0].mxu0
        %732 = vdwg.mxu0
        %733 = vmatprep.subr.mxu0 0.0
        %v734 = vand.u32 %v222, 4294901760
        %735 = vmatpush1.msra.mxu0 %v734
        %736 = vmatprep.subr.mxu0 0.0
        %737 = vmatpush1.msra.mxu0 0.0
        %738 = vmatprep.subr.mxu0 0.0
        %739 = vmatpush1.msra.mxu0 0.0
        %740 = vmatprep.subr.mxu0 0.0
        %741 = vmatpush1.msra.mxu0 0.0
        %742 = vmatprep.subr.mxu0 0.0
        %743 = vmatpush1.msra.mxu0 0.0
        %744 = vmatprep.subr.mxu0 0.0
        %745 = vmatpush1.msra.mxu0 0.0
        %746 = vmatprep.subr.mxu0 0.0
        %747 = vmatpush1.msra.mxu0 0.0
        %748 = vmatprep.subr.mxu0 0.0
        %749 = vmatpush1.msra.mxu0 0.0
        %750 = vmatprep.subr.mxu0 0.0
        %751 = vmatpush1.msra.mxu0 0.0
        %752 = vmatprep.subr.mxu0 0.0
        %753 = vmatpush1.msra.mxu0 0.0
        %754 = vmatprep.subr.mxu0 0.0
        %755 = vmatpush1.msra.mxu0 0.0
        %756 = vmatprep.subr.mxu0 0.0
        %757 = vmatpush1.msra.mxu0 0.0
        %758 = vmatprep.subr.mxu0 0.0
        %759 = vmatpush1.msra.mxu0 0.0
        %760 = vmatprep.subr.mxu0 0.0
        %761 = vmatpush1.msra.mxu0 0.0
        %762 = vmatprep.subr.mxu0 0.0
        %763 = vmatpush1.msra.mxu0 0.0
        %764 = vmatprep.subr.mxu0 0.0
        %765 = vmatpush1.msra.mxu0 0.0
        %766 = vmatprep.subr.mxu0 0.0
        %767 = vmatpush1.msra.mxu0 0.0
        %768 = vmatprep.subr.mxu0 0.0
        %769 = vmatpush1.msra.mxu0 0.0
        %770 = vmatprep.subr.mxu0 0.0
        %771 = vmatpush1.msra.mxu0 0.0
        %772 = vmatprep.subr.mxu0 0.0
        %773 = vmatpush1.msra.mxu0 0.0
        %774 = vmatprep.subr.mxu0 0.0
        %775 = vmatpush1.msra.mxu0 0.0
        %776 = vmatprep.subr.mxu0 0.0
        %777 = vmatpush1.msra.mxu0 0.0
        %778 = vmatprep.subr.mxu0 0.0
        %779 = vmatpush1.msra.mxu0 0.0
        %780 = vmatprep.subr.mxu0 0.0
        %781 = vmatpush1.msra.mxu0 0.0
        %782 = vmatprep.subr.mxu0 0.0
        %783 = vmatpush1.msra.mxu0 0.0
        %784 = vmatprep.subr.mxu0 0.0
        %785 = vmatpush1.msra.mxu0 0.0
        %786 = vmatprep.subr.mxu0 0.0
        %787 = vmatpush1.msra.mxu0 0.0
        %788 = vmatprep.subr.mxu0 0.0
        %789 = vmatpush1.msra.mxu0 0.0
        %790 = vmatprep.subr.mxu0 0.0
        %791 = vmatpush1.msra.mxu0 0.0
        %792 = vmatprep.subr.mxu0 0.0
        %793 = vmatpush1.msra.mxu0 0.0
        %794 = vmatprep.subr.mxu0 0.0
        %795 = vmatpush1.msra.mxu0 0.0
        %796 = vmatprep.subr.mxu0 0.0
        %797 = vmatpush1.msra.mxu0 0.0
        %798 = vmatprep.mubr.f32.mxu0 0.0
        %v799 = vand.u32 %v237, 4294901760
        %800 = vmatmul.mubr.f32.gmra.mrb[0].mxu0 %v799
        %v801 = vpop.f32.mrb[0].mxu0
        %v802 = vadd.f32 %v712, %v801
        %v803 = vpop.f32.mrb[0].mxu0
        %804 = vmatprep.mubr.f32.mxu0 0.0
        %v805 = vand.u32 %v240, 4294901760
        %806 = vmatmul.mubr.f32.gmra.mrb[0].mxu0 %v805
        %v807 = vpop.f32.mrb[0].mxu0
        %v808 = vadd.f32 %v718, %v807
        %v809 = vpop.f32.mrb[0].mxu0
        %810 = vmatprep.mubr.f32.mxu0 0.0
        %v811 = vand.u32 %v243, 4294901760
        %812 = vmatmul.mubr.f32.gmra.mrb[0].mxu0 %v811
        %v813 = vpop.f32.mrb[0].mxu0
        %v814 = vadd.f32 %v724, %v813
        %v815 = vpop.f32.mrb[0].mxu0
        %816 = vmatprep.mubr.f32.mxu0 0.0
        %v817 = vand.u32 %v246, 4294901760
        %818 = vmatmul.mubr.f32.gmra.mrb[0].mxu0 %v817
        %v819 = vpop.f32.mrb[0].mxu0
        %v820 = vadd.f32 %v730, %v819
        %v821 = vpop.f32.mrb[0].mxu0
        %822 = vdwg.mxu0
        %v823 = vld [vmem:[%s4] sm:$0xff]
        %v824 = vld [vmem:[%s4 + $0x8] sm:$0xff]
        %v825 = vld [vmem:[%s4 + $0x10] sm:$0xff]
        %v826 = vld [vmem:[%s4 + $0x18] sm:$0xff]
        %v828 = vsel %vm235, %v823, 0
        %v831 = vsel %vm235, %v824, 0
        %v834 = vsel %vm235, %v825, 0
        %v837 = vsel %vm235, %v826, 0
        %839 = vmatprep.subr.mxu0 0.0
        %v840 = vand.u32 %v230, 4294901760
        %841 = vmatpush1.msra.mxu0 %v840
        %842 = vmatprep.subr.mxu0 0.0
        %843 = vmatpush1.msra.mxu0 0.0
        %844 = vmatprep.subr.mxu0 0.0
        %845 = vmatpush1.msra.mxu0 0.0
        %846 = vmatprep.subr.mxu0 0.0
        %847 = vmatpush1.msra.mxu0 0.0
        %848 = vmatprep.subr.mxu0 0.0
        %849 = vmatpush1.msra.mxu0 0.0
        %850 = vmatprep.subr.mxu0 0.0
        %851 = vmatpush1.msra.mxu0 0.0
        %852 = vmatprep.subr.mxu0 0.0
        %853 = vmatpush1.msra.mxu0 0.0
        %854 = vmatprep.subr.mxu0 0.0
        %855 = vmatpush1.msra.mxu0 0.0
        %856 = vmatprep.subr.mxu0 0.0
        %857 = vmatpush1.msra.mxu0 0.0
        %858 = vmatprep.subr.mxu0 0.0
        %859 = vmatpush1.msra.mxu0 0.0
        %860 = vmatprep.subr.mxu0 0.0
        %861 = vmatpush1.msra.mxu0 0.0
        %862 = vmatprep.subr.mxu0 0.0
        %863 = vmatpush1.msra.mxu0 0.0
        %864 = vmatprep.subr.mxu0 0.0
        %865 = vmatpush1.msra.mxu0 0.0
        %866 = vmatprep.subr.mxu0 0.0
        %867 = vmatpush1.msra.mxu0 0.0
        %868 = vmatprep.subr.mxu0 0.0
        %869 = vmatpush1.msra.mxu0 0.0
        %870 = vmatprep.subr.mxu0 0.0
        %871 = vmatpush1.msra.mxu0 0.0
        %872 = vmatprep.subr.mxu0 0.0
        %873 = vmatpush1.msra.mxu0 0.0
        %874 = vmatprep.subr.mxu0 0.0
        %875 = vmatpush1.msra.mxu0 0.0
        %876 = vmatprep.subr.mxu0 0.0
        %877 = vmatpush1.msra.mxu0 0.0
        %878 = vmatprep.subr.mxu0 0.0
        %879 = vmatpush1.msra.mxu0 0.0
        %880 = vmatprep.subr.mxu0 0.0
        %881 = vmatpush1.msra.mxu0 0.0
        %882 = vmatprep.subr.mxu0 0.0
        %883 = vmatpush1.msra.mxu0 0.0
        %884 = vmatprep.subr.mxu0 0.0
        %885 = vmatpush1.msra.mxu0 0.0
        %886 = vmatprep.subr.mxu0 0.0
        %887 = vmatpush1.msra.mxu0 0.0
        %888 = vmatprep.subr.mxu0 0.0
        %889 = vmatpush1.msra.mxu0 0.0
        %890 = vmatprep.subr.mxu0 0.0
        %891 = vmatpush1.msra.mxu0 0.0
        %892 = vmatprep.subr.mxu0 0.0
        %893 = vmatpush1.msra.mxu0 0.0
        %894 = vmatprep.subr.mxu0 0.0
        %895 = vmatpush1.msra.mxu0 0.0
        %896 = vmatprep.subr.mxu0 0.0
        %897 = vmatpush1.msra.mxu0 0.0
        %898 = vmatprep.subr.mxu0 0.0
        %899 = vmatpush1.msra.mxu0 0.0
        %900 = vmatprep.subr.mxu0 0.0
        %901 = vmatpush1.msra.mxu0 0.0
        %902 = vmatprep.subr.mxu0 0.0
        %903 = vmatpush1.msra.mxu0 0.0
        %904 = vmatprep.mubr.f32.mxu0 0.0
        %v905 = vand.u32 %v828, 4294901760
        %v906 = vsub.f32 %v828, %v905
        %v907 = vand.u32 %v906, 4294901760
        %v908 = vsub.f32 %v906, %v907
        %v909 = vand.u32 %v908, 4294901760
        %910 = vmatmul.mubr.f32.gmra.mrb[0].mxu0 %v909
        %v911 = vpop.f32.mrb[0].mxu0
        %v912 = vadd.f32 0.0, %v911
        %v913 = vpop.f32.mrb[0].mxu0
        %914 = vmatprep.mubr.f32.mxu0 0.0
        %v915 = vand.u32 %v831, 4294901760
        %v916 = vsub.f32 %v831, %v915
        %v917 = vand.u32 %v916, 4294901760
        %v918 = vsub.f32 %v916, %v917
        %v919 = vand.u32 %v918, 4294901760
        %920 = vmatmul.mubr.f32.gmra.mrb[0].mxu0 %v919
        %v921 = vpop.f32.mrb[0].mxu0
        %v922 = vadd.f32 0.0, %v921
        %v923 = vpop.f32.mrb[0].mxu0
        %924 = vmatprep.mubr.f32.mxu0 0.0
        %v925 = vand.u32 %v834, 4294901760
        %v926 = vsub.f32 %v834, %v925
        %v927 = vand.u32 %v926, 4294901760
        %v928 = vsub.f32 %v926, %v927
        %v929 = vand.u32 %v928, 4294901760
        %930 = vmatmul.mubr.f32.gmra.mrb[0].mxu0 %v929
        %v931 = vpop.f32.mrb[0].mxu0
        %v932 = vadd.f32 0.0, %v931
        %v933 = vpop.f32.mrb[0].mxu0
        %934 = vmatprep.mubr.f32.mxu0 0.0
        %v935 = vand.u32 %v837, 4294901760
        %v936 = vsub.f32 %v837, %v935
        %v937 = vand.u32 %v936, 4294901760
        %v938 = vsub.f32 %v936, %v937
        %v939 = vand.u32 %v938, 4294901760
        %940 = vmatmul.mubr.f32.gmra.mrb[0].mxu0 %v939
        %v941 = vpop.f32.mrb[0].mxu0
        %v942 = vadd.f32 0.0, %v941
        %v943 = vpop.f32.mrb[0].mxu0
        %944 = vdwg.mxu0
        %945 = vmatprep.subr.mxu0 0.0
        %v946 = vand.u32 %v230, 4294901760
        %v947 = vsub.f32 %v230, %v946
        %v948 = vand.u32 %v947, 4294901760
        %v949 = vsub.f32 %v947, %v948
        %v950 = vand.u32 %v949, 4294901760
        %951 = vmatpush1.msra.mxu0 %v950
        %952 = vmatprep.subr.mxu0 0.0
        %953 = vmatpush1.msra.mxu0 0.0
        %954 = vmatprep.subr.mxu0 0.0
        %955 = vmatpush1.msra.mxu0 0.0
        %956 = vmatprep.subr.mxu0 0.0
        %957 = vmatpush1.msra.mxu0 0.0
        %958 = vmatprep.subr.mxu0 0.0
        %959 = vmatpush1.msra.mxu0 0.0
        %960 = vmatprep.subr.mxu0 0.0
        %961 = vmatpush1.msra.mxu0 0.0
        %962 = vmatprep.subr.mxu0 0.0
        %963 = vmatpush1.msra.mxu0 0.0
        %964 = vmatprep.subr.mxu0 0.0
        %965 = vmatpush1.msra.mxu0 0.0
        %966 = vmatprep.subr.mxu0 0.0
        %967 = vmatpush1.msra.mxu0 0.0
        %968 = vmatprep.subr.mxu0 0.0
        %969 = vmatpush1.msra.mxu0 0.0
        %970 = vmatprep.subr.mxu0 0.0
        %971 = vmatpush1.msra.mxu0 0.0
        %972 = vmatprep.subr.mxu0 0.0
        %973 = vmatpush1.msra.mxu0 0.0
        %974 = vmatprep.subr.mxu0 0.0
        %975 = vmatpush1.msra.mxu0 0.0
        %976 = vmatprep.subr.mxu0 0.0
        %977 = vmatpush1.msra.mxu0 0.0
        %978 = vmatprep.subr.mxu0 0.0
        %979 = vmatpush1.msra.mxu0 0.0
        %980 = vmatprep.subr.mxu0 0.0
        %981 = vmatpush1.msra.mxu0 0.0
        %982 = vmatprep.subr.mxu0 0.0
        %983 = vmatpush1.msra.mxu0 0.0
        %984 = vmatprep.subr.mxu0 0.0
        %985 = vmatpush1.msra.mxu0 0.0
        %986 = vmatprep.subr.mxu0 0.0
        %987 = vmatpush1.msra.mxu0 0.0
        %988 = vmatprep.subr.mxu0 0.0
        %989 = vmatpush1.msra.mxu0 0.0
        %990 = vmatprep.subr.mxu0 0.0
        %991 = vmatpush1.msra.mxu0 0.0
        %992 = vmatprep.subr.mxu0 0.0
        %993 = vmatpush1.msra.mxu0 0.0
        %994 = vmatprep.subr.mxu0 0.0
        %995 = vmatpush1.msra.mxu0 0.0
        %996 = vmatprep.subr.mxu0 0.0
        %997 = vmatpush1.msra.mxu0 0.0
        %998 = vmatprep.subr.mxu0 0.0
        %999 = vmatpush1.msra.mxu0 0.0
        %1000 = vmatprep.subr.mxu0 0.0
        %1001 = vmatpush1.msra.mxu0 0.0
        %1002 = vmatprep.subr.mxu0 0.0
        %1003 = vmatpush1.msra.mxu0 0.0
        %1004 = vmatprep.subr.mxu0 0.0
        %1005 = vmatpush1.msra.mxu0 0.0
        %1006 = vmatprep.subr.mxu0 0.0
        %1007 = vmatpush1.msra.mxu0 0.0
        %1008 = vmatprep.subr.mxu0 0.0
        %1009 = vmatpush1.msra.mxu0 0.0
        %1010 = vmatprep.subr.mxu0 0.0
        %1011 = vmatpush1.msra.mxu0 0.0
        %1012 = vmatprep.subr.mxu0 0.0
        %1013 = vmatpush1.msra.mxu0 0.0
        %1014 = vmatprep.mubr.f32.mxu0 0.0
        %v1015 = vand.u32 %v828, 4294901760
        %1016 = vmatmul.mubr.f32.gmra.mrb[0].mxu0 %v1015
        %v1017 = vpop.f32.mrb[0].mxu0
        %v1018 = vadd.f32 %v912, %v1017
        %v1019 = vpop.f32.mrb[0].mxu0
        %1020 = vmatprep.mubr.f32.mxu0 0.0
        %v1021 = vand.u32 %v831, 4294901760
        %1022 = vmatmul.mubr.f32.gmra.mrb[0].mxu0 %v1021
        %v1023 = vpop.f32.mrb[0].mxu0
        %v1024 = vadd.f32 %v922, %v1023
        %v1025 = vpop.f32.mrb[0].mxu0
        %1026 = vmatprep.mubr.f32.mxu0 0.0
        %v1027 = vand.u32 %v834, 4294901760
        %1028 = vmatmul.mubr.f32.gmra.mrb[0].mxu0 %v1027
        %v1029 = vpop.f32.mrb[0].mxu0
        %v1030 = vadd.f32 %v932, %v1029
        %v1031 = vpop.f32.mrb[0].mxu0
        %1032 = vmatprep.mubr.f32.mxu0 0.0
        %v1033 = vand.u32 %v837, 4294901760
        %1034 = vmatmul.mubr.f32.gmra.mrb[0].mxu0 %v1033
        %v1035 = vpop.f32.mrb[0].mxu0
        %v1036 = vadd.f32 %v942, %v1035
        %v1037 = vpop.f32.mrb[0].mxu0
        %1038 = vdwg.mxu0
        %1039 = vmatprep.subr.mxu0 0.0
        %v1040 = vand.u32 %v230, 4294901760
        %v1041 = vsub.f32 %v230, %v1040
        %1042 = vmatpush1.msra.mxu0 %v1041
        %1043 = vmatprep.subr.mxu0 0.0
        %1044 = vmatpush1.msra.mxu0 0.0
        %1045 = vmatprep.subr.mxu0 0.0
        %1046 = vmatpush1.msra.mxu0 0.0
        %1047 = vmatprep.subr.mxu0 0.0
        %1048 = vmatpush1.msra.mxu0 0.0
        %1049 = vmatprep.subr.mxu0 0.0
        %1050 = vmatpush1.msra.mxu0 0.0
        %1051 = vmatprep.subr.mxu0 0.0
        %1052 = vmatpush1.msra.mxu0 0.0
        %1053 = vmatprep.subr.mxu0 0.0
        %1054 = vmatpush1.msra.mxu0 0.0
        %1055 = vmatprep.subr.mxu0 0.0
        %1056 = vmatpush1.msra.mxu0 0.0
        %1057 = vmatprep.subr.mxu0 0.0
        %1058 = vmatpush1.msra.mxu0 0.0
        %1059 = vmatprep.subr.mxu0 0.0
        %1060 = vmatpush1.msra.mxu0 0.0
        %1061 = vmatprep.subr.mxu0 0.0
        %1062 = vmatpush1.msra.mxu0 0.0
        %1063 = vmatprep.subr.mxu0 0.0
        %1064 = vmatpush1.msra.mxu0 0.0
        %1065 = vmatprep.subr.mxu0 0.0
        %1066 = vmatpush1.msra.mxu0 0.0
        %1067 = vmatprep.subr.mxu0 0.0
        %1068 = vmatpush1.msra.mxu0 0.0
        %1069 = vmatprep.subr.mxu0 0.0
        %1070 = vmatpush1.msra.mxu0 0.0
        %1071 = vmatprep.subr.mxu0 0.0
        %1072 = vmatpush1.msra.mxu0 0.0
        %1073 = vmatprep.subr.mxu0 0.0
        %1074 = vmatpush1.msra.mxu0 0.0
        %1075 = vmatprep.subr.mxu0 0.0
        %1076 = vmatpush1.msra.mxu0 0.0
        %1077 = vmatprep.subr.mxu0 0.0
        %1078 = vmatpush1.msra.mxu0 0.0
        %1079 = vmatprep.subr.mxu0 0.0
        %1080 = vmatpush1.msra.mxu0 0.0
        %1081 = vmatprep.subr.mxu0 0.0
        %1082 = vmatpush1.msra.mxu0 0.0
        %1083 = vmatprep.subr.mxu0 0.0
        %1084 = vmatpush1.msra.mxu0 0.0
        %1085 = vmatprep.subr.mxu0 0.0
        %1086 = vmatpush1.msra.mxu0 0.0
        %1087 = vmatprep.subr.mxu0 0.0
        %1088 = vmatpush1.msra.mxu0 0.0
        %1089 = vmatprep.subr.mxu0 0.0
        %1090 = vmatpush1.msra.mxu0 0.0
        %1091 = vmatprep.subr.mxu0 0.0
        %1092 = vmatpush1.msra.mxu0 0.0
        %1093 = vmatprep.subr.mxu0 0.0
        %1094 = vmatpush1.msra.mxu0 0.0
        %1095 = vmatprep.subr.mxu0 0.0
        %1096 = vmatpush1.msra.mxu0 0.0
        %1097 = vmatprep.subr.mxu0 0.0
        %1098 = vmatpush1.msra.mxu0 0.0
        %1099 = vmatprep.subr.mxu0 0.0
        %1100 = vmatpush1.msra.mxu0 0.0
        %1101 = vmatprep.subr.mxu0 0.0
        %1102 = vmatpush1.msra.mxu0 0.0
        %1103 = vmatprep.subr.mxu0 0.0
        %1104 = vmatpush1.msra.mxu0 0.0
        %1105 = vmatprep.mubr.f32.mxu0 0.0
        %v1106 = vand.u32 %v828, 4294901760
        %v1107 = vsub.f32 %v828, %v1106
        %1108 = vmatmul.mubr.f32.gmra.mrb[0].mxu0 %v1107
        %v1109 = vpop.f32.mrb[0].mxu0
        %v1110 = vadd.f32 %v1018, %v1109
        %v1111 = vpop.f32.mrb[0].mxu0
        %1112 = vmatprep.mubr.f32.mxu0 0.0
        %v1113 = vand.u32 %v831, 4294901760
        %v1114 = vsub.f32 %v831, %v1113
        %1115 = vmatmul.mubr.f32.gmra.mrb[0].mxu0 %v1114
        %v1116 = vpop.f32.mrb[0].mxu0
        %v1117 = vadd.f32 %v1024, %v1116
        %v1118 = vpop.f32.mrb[0].mxu0
        %1119 = vmatprep.mubr.f32.mxu0 0.0
        %v1120 = vand.u32 %v834, 4294901760
        %v1121 = vsub.f32 %v834, %v1120
        %1122 = vmatmul.mubr.f32.gmra.mrb[0].mxu0 %v1121
        %v1123 = vpop.f32.mrb[0].mxu0
        %v1124 = vadd.f32 %v1030, %v1123
        %v1125 = vpop.f32.mrb[0].mxu0
        %1126 = vmatprep.mubr.f32.mxu0 0.0
        %v1127 = vand.u32 %v837, 4294901760
        %v1128 = vsub.f32 %v837, %v1127
        %1129 = vmatmul.mubr.f32.gmra.mrb[0].mxu0 %v1128
        %v1130 = vpop.f32.mrb[0].mxu0
        %v1131 = vadd.f32 %v1036, %v1130
        %v1132 = vpop.f32.mrb[0].mxu0
        %1133 = vdwg.mxu0
        %1134 = vmatprep.subr.mxu0 0.0
        %v1135 = vand.u32 %v230, 4294901760
        %1136 = vmatpush1.msra.mxu0 %v1135
        %1137 = vmatprep.subr.mxu0 0.0
        %1138 = vmatpush1.msra.mxu0 0.0
        %1139 = vmatprep.subr.mxu0 0.0
        %1140 = vmatpush1.msra.mxu0 0.0
        %1141 = vmatprep.subr.mxu0 0.0
        %1142 = vmatpush1.msra.mxu0 0.0
        %1143 = vmatprep.subr.mxu0 0.0
        %1144 = vmatpush1.msra.mxu0 0.0
        %1145 = vmatprep.subr.mxu0 0.0
        %1146 = vmatpush1.msra.mxu0 0.0
        %1147 = vmatprep.subr.mxu0 0.0
        %1148 = vmatpush1.msra.mxu0 0.0
        %1149 = vmatprep.subr.mxu0 0.0
        %1150 = vmatpush1.msra.mxu0 0.0
        %1151 = vmatprep.subr.mxu0 0.0
        %1152 = vmatpush1.msra.mxu0 0.0
        %1153 = vmatprep.subr.mxu0 0.0
        %1154 = vmatpush1.msra.mxu0 0.0
        %1155 = vmatprep.subr.mxu0 0.0
        %1156 = vmatpush1.msra.mxu0 0.0
        %1157 = vmatprep.subr.mxu0 0.0
        %1158 = vmatpush1.msra.mxu0 0.0
        %1159 = vmatprep.subr.mxu0 0.0
        %1160 = vmatpush1.msra.mxu0 0.0
        %1161 = vmatprep.subr.mxu0 0.0
        %1162 = vmatpush1.msra.mxu0 0.0
        %1163 = vmatprep.subr.mxu0 0.0
        %1164 = vmatpush1.msra.mxu0 0.0
        %1165 = vmatprep.subr.mxu0 0.0
        %1166 = vmatpush1.msra.mxu0 0.0
        %1167 = vmatprep.subr.mxu0 0.0
        %1168 = vmatpush1.msra.mxu0 0.0
        %1169 = vmatprep.subr.mxu0 0.0
        %1170 = vmatpush1.msra.mxu0 0.0
        %1171 = vmatprep.subr.mxu0 0.0
        %1172 = vmatpush1.msra.mxu0 0.0
        %1173 = vmatprep.subr.mxu0 0.0
        %1174 = vmatpush1.msra.mxu0 0.0
        %1175 = vmatprep.subr.mxu0 0.0
        %1176 = vmatpush1.msra.mxu0 0.0
        %1177 = vmatprep.subr.mxu0 0.0
        %1178 = vmatpush1.msra.mxu0 0.0
        %1179 = vmatprep.subr.mxu0 0.0
        %1180 = vmatpush1.msra.mxu0 0.0
        %1181 = vmatprep.subr.mxu0 0.0
        %1182 = vmatpush1.msra.mxu0 0.0
        %1183 = vmatprep.subr.mxu0 0.0
        %1184 = vmatpush1.msra.mxu0 0.0
        %1185 = vmatprep.subr.mxu0 0.0
        %1186 = vmatpush1.msra.mxu0 0.0
        %1187 = vmatprep.subr.mxu0 0.0
        %1188 = vmatpush1.msra.mxu0 0.0
        %1189 = vmatprep.subr.mxu0 0.0
        %1190 = vmatpush1.msra.mxu0 0.0
        %1191 = vmatprep.subr.mxu0 0.0
        %1192 = vmatpush1.msra.mxu0 0.0
        %1193 = vmatprep.subr.mxu0 0.0
        %1194 = vmatpush1.msra.mxu0 0.0
        %1195 = vmatprep.subr.mxu0 0.0
        %1196 = vmatpush1.msra.mxu0 0.0
        %1197 = vmatprep.subr.mxu0 0.0
        %1198 = vmatpush1.msra.mxu0 0.0
        %1199 = vmatprep.mubr.f32.mxu0 0.0
        %v1200 = vand.u32 %v828, 4294901760
        %v1201 = vsub.f32 %v828, %v1200
        %v1202 = vand.u32 %v1201, 4294901760
        %1203 = vmatmul.mubr.f32.gmra.mrb[0].mxu0 %v1202
        %v1204 = vpop.f32.mrb[0].mxu0
        %v1205 = vadd.f32 %v1110, %v1204
        %v1206 = vpop.f32.mrb[0].mxu0
        %1207 = vmatprep.mubr.f32.mxu0 0.0
        %v1208 = vand.u32 %v831, 4294901760
        %v1209 = vsub.f32 %v831, %v1208
        %v1210 = vand.u32 %v1209, 4294901760
        %1211 = vmatmul.mubr.f32.gmra.mrb[0].mxu0 %v1210
        %v1212 = vpop.f32.mrb[0].mxu0
        %v1213 = vadd.f32 %v1117, %v1212
        %v1214 = vpop.f32.mrb[0].mxu0
        %1215 = vmatprep.mubr.f32.mxu0 0.0
        %v1216 = vand.u32 %v834, 4294901760
        %v1217 = vsub.f32 %v834, %v1216
        %v1218 = vand.u32 %v1217, 4294901760
        %1219 = vmatmul.mubr.f32.gmra.mrb[0].mxu0 %v1218
        %v1220 = vpop.f32.mrb[0].mxu0
        %v1221 = vadd.f32 %v1124, %v1220
        %v1222 = vpop.f32.mrb[0].mxu0
        %1223 = vmatprep.mubr.f32.mxu0 0.0
        %v1224 = vand.u32 %v837, 4294901760
        %v1225 = vsub.f32 %v837, %v1224
        %v1226 = vand.u32 %v1225, 4294901760
        %1227 = vmatmul.mubr.f32.gmra.mrb[0].mxu0 %v1226
        %v1228 = vpop.f32.mrb[0].mxu0
        %v1229 = vadd.f32 %v1131, %v1228
        %v1230 = vpop.f32.mrb[0].mxu0
        %1231 = vdwg.mxu0
        %1232 = vmatprep.subr.mxu0 0.0
        %v1233 = vand.u32 %v230, 4294901760
        %v1234 = vsub.f32 %v230, %v1233
        %v1235 = vand.u32 %v1234, 4294901760
        %1236 = vmatpush1.msra.mxu0 %v1235
        %1237 = vmatprep.subr.mxu0 0.0
        %1238 = vmatpush1.msra.mxu0 0.0
        %1239 = vmatprep.subr.mxu0 0.0
        %1240 = vmatpush1.msra.mxu0 0.0
        %1241 = vmatprep.subr.mxu0 0.0
        %1242 = vmatpush1.msra.mxu0 0.0
        %1243 = vmatprep.subr.mxu0 0.0
        %1244 = vmatpush1.msra.mxu0 0.0
        %1245 = vmatprep.subr.mxu0 0.0
        %1246 = vmatpush1.msra.mxu0 0.0
        %1247 = vmatprep.subr.mxu0 0.0
        %1248 = vmatpush1.msra.mxu0 0.0
        %1249 = vmatprep.subr.mxu0 0.0
        %1250 = vmatpush1.msra.mxu0 0.0
        %1251 = vmatprep.subr.mxu0 0.0
        %1252 = vmatpush1.msra.mxu0 0.0
        %1253 = vmatprep.subr.mxu0 0.0
        %1254 = vmatpush1.msra.mxu0 0.0
        %1255 = vmatprep.subr.mxu0 0.0
        %1256 = vmatpush1.msra.mxu0 0.0
        %1257 = vmatprep.subr.mxu0 0.0
        %1258 = vmatpush1.msra.mxu0 0.0
        %1259 = vmatprep.subr.mxu0 0.0
        %1260 = vmatpush1.msra.mxu0 0.0
        %1261 = vmatprep.subr.mxu0 0.0
        %1262 = vmatpush1.msra.mxu0 0.0
        %1263 = vmatprep.subr.mxu0 0.0
        %1264 = vmatpush1.msra.mxu0 0.0
        %1265 = vmatprep.subr.mxu0 0.0
        %1266 = vmatpush1.msra.mxu0 0.0
        %1267 = vmatprep.subr.mxu0 0.0
        %1268 = vmatpush1.msra.mxu0 0.0
        %1269 = vmatprep.subr.mxu0 0.0
        %1270 = vmatpush1.msra.mxu0 0.0
        %1271 = vmatprep.subr.mxu0 0.0
        %1272 = vmatpush1.msra.mxu0 0.0
        %1273 = vmatprep.subr.mxu0 0.0
        %1274 = vmatpush1.msra.mxu0 0.0
        %1275 = vmatprep.subr.mxu0 0.0
        %1276 = vmatpush1.msra.mxu0 0.0
        %1277 = vmatprep.subr.mxu0 0.0
        %1278 = vmatpush1.msra.mxu0 0.0
        %1279 = vmatprep.subr.mxu0 0.0
        %1280 = vmatpush1.msra.mxu0 0.0
        %1281 = vmatprep.subr.mxu0 0.0
        %1282 = vmatpush1.msra.mxu0 0.0
        %1283 = vmatprep.subr.mxu0 0.0
        %1284 = vmatpush1.msra.mxu0 0.0
        %1285 = vmatprep.subr.mxu0 0.0
        %1286 = vmatpush1.msra.mxu0 0.0
        %1287 = vmatprep.subr.mxu0 0.0
        %1288 = vmatpush1.msra.mxu0 0.0
        %1289 = vmatprep.subr.mxu0 0.0
        %1290 = vmatpush1.msra.mxu0 0.0
        %1291 = vmatprep.subr.mxu0 0.0
        %1292 = vmatpush1.msra.mxu0 0.0
        %1293 = vmatprep.subr.mxu0 0.0
        %1294 = vmatpush1.msra.mxu0 0.0
        %1295 = vmatprep.subr.mxu0 0.0
        %1296 = vmatpush1.msra.mxu0 0.0
        %1297 = vmatprep.subr.mxu0 0.0
        %1298 = vmatpush1.msra.mxu0 0.0
        %1299 = vmatprep.mubr.f32.mxu0 0.0
        %v1300 = vand.u32 %v828, 4294901760
        %1301 = vmatmul.mubr.f32.gmra.mrb[0].mxu0 %v1300
        %v1302 = vpop.f32.mrb[0].mxu0
        %v1303 = vadd.f32 %v1205, %v1302
        %v1304 = vpop.f32.mrb[0].mxu0
        %1305 = vmatprep.mubr.f32.mxu0 0.0
        %v1306 = vand.u32 %v831, 4294901760
        %1307 = vmatmul.mubr.f32.gmra.mrb[0].mxu0 %v1306
        %v1308 = vpop.f32.mrb[0].mxu0
        %v1309 = vadd.f32 %v1213, %v1308
        %v1310 = vpop.f32.mrb[0].mxu0
        %1311 = vmatprep.mubr.f32.mxu0 0.0
        %v1312 = vand.u32 %v834, 4294901760
        %1313 = vmatmul.mubr.f32.gmra.mrb[0].mxu0 %v1312
        %v1314 = vpop.f32.mrb[0].mxu0
        %v1315 = vadd.f32 %v1221, %v1314
        %v1316 = vpop.f32.mrb[0].mxu0
        %1317 = vmatprep.mubr.f32.mxu0 0.0
        %v1318 = vand.u32 %v837, 4294901760
        %1319 = vmatmul.mubr.f32.gmra.mrb[0].mxu0 %v1318
        %v1320 = vpop.f32.mrb[0].mxu0
        %v1321 = vadd.f32 %v1229, %v1320
        %v1322 = vpop.f32.mrb[0].mxu0
        %1323 = vdwg.mxu0
        %1324 = vmatprep.subr.mxu0 0.0
        %v1325 = vand.u32 %v230, 4294901760
        %1326 = vmatpush1.msra.mxu0 %v1325
        %1327 = vmatprep.subr.mxu0 0.0
        %1328 = vmatpush1.msra.mxu0 0.0
        %1329 = vmatprep.subr.mxu0 0.0
        %1330 = vmatpush1.msra.mxu0 0.0
        %1331 = vmatprep.subr.mxu0 0.0
        %1332 = vmatpush1.msra.mxu0 0.0
        %1333 = vmatprep.subr.mxu0 0.0
        %1334 = vmatpush1.msra.mxu0 0.0
        %1335 = vmatprep.subr.mxu0 0.0
        %1336 = vmatpush1.msra.mxu0 0.0
        %1337 = vmatprep.subr.mxu0 0.0
        %1338 = vmatpush1.msra.mxu0 0.0
        %1339 = vmatprep.subr.mxu0 0.0
        %1340 = vmatpush1.msra.mxu0 0.0
        %1341 = vmatprep.subr.mxu0 0.0
        %1342 = vmatpush1.msra.mxu0 0.0
        %1343 = vmatprep.subr.mxu0 0.0
        %1344 = vmatpush1.msra.mxu0 0.0
        %1345 = vmatprep.subr.mxu0 0.0
        %1346 = vmatpush1.msra.mxu0 0.0
        %1347 = vmatprep.subr.mxu0 0.0
        %1348 = vmatpush1.msra.mxu0 0.0
        %1349 = vmatprep.subr.mxu0 0.0
        %1350 = vmatpush1.msra.mxu0 0.0
        %1351 = vmatprep.subr.mxu0 0.0
        %1352 = vmatpush1.msra.mxu0 0.0
        %1353 = vmatprep.subr.mxu0 0.0
        %1354 = vmatpush1.msra.mxu0 0.0
        %1355 = vmatprep.subr.mxu0 0.0
        %1356 = vmatpush1.msra.mxu0 0.0
        %1357 = vmatprep.subr.mxu0 0.0
        %1358 = vmatpush1.msra.mxu0 0.0
        %1359 = vmatprep.subr.mxu0 0.0
        %1360 = vmatpush1.msra.mxu0 0.0
        %1361 = vmatprep.subr.mxu0 0.0
        %1362 = vmatpush1.msra.mxu0 0.0
        %1363 = vmatprep.subr.mxu0 0.0
        %1364 = vmatpush1.msra.mxu0 0.0
        %1365 = vmatprep.subr.mxu0 0.0
        %1366 = vmatpush1.msra.mxu0 0.0
        %1367 = vmatprep.subr.mxu0 0.0
        %1368 = vmatpush1.msra.mxu0 0.0
        %1369 = vmatprep.subr.mxu0 0.0
        %1370 = vmatpush1.msra.mxu0 0.0
        %1371 = vmatprep.subr.mxu0 0.0
        %1372 = vmatpush1.msra.mxu0 0.0
        %1373 = vmatprep.subr.mxu0 0.0
        %1374 = vmatpush1.msra.mxu0 0.0
        %1375 = vmatprep.subr.mxu0 0.0
        %1376 = vmatpush1.msra.mxu0 0.0
        %1377 = vmatprep.subr.mxu0 0.0
        %1378 = vmatpush1.msra.mxu0 0.0
        %1379 = vmatprep.subr.mxu0 0.0
        %1380 = vmatpush1.msra.mxu0 0.0
        %1381 = vmatprep.subr.mxu0 0.0
        %1382 = vmatpush1.msra.mxu0 0.0
        %1383 = vmatprep.subr.mxu0 0.0
        %1384 = vmatpush1.msra.mxu0 0.0
        %1385 = vmatprep.subr.mxu0 0.0
        %1386 = vmatpush1.msra.mxu0 0.0
        %1387 = vmatprep.subr.mxu0 0.0
        %1388 = vmatpush1.msra.mxu0 0.0
        %1389 = vmatprep.mubr.f32.mxu0 0.0
        %v1390 = vand.u32 %v828, 4294901760
        %1391 = vmatmul.mubr.f32.gmra.mrb[0].mxu0 %v1390
        %v1392 = vpop.f32.mrb[0].mxu0
        %v1393 = vadd.f32 %v1303, %v1392
        %v1394 = vpop.f32.mrb[0].mxu0
        %1395 = vmatprep.mubr.f32.mxu0 0.0
        %v1396 = vand.u32 %v831, 4294901760
        %1397 = vmatmul.mubr.f32.gmra.mrb[0].mxu0 %v1396
        %v1398 = vpop.f32.mrb[0].mxu0
        %v1399 = vadd.f32 %v1309, %v1398
        %v1400 = vpop.f32.mrb[0].mxu0
        %1401 = vmatprep.mubr.f32.mxu0 0.0
        %v1402 = vand.u32 %v834, 4294901760
        %1403 = vmatmul.mubr.f32.gmra.mrb[0].mxu0 %v1402
        %v1404 = vpop.f32.mrb[0].mxu0
        %v1405 = vadd.f32 %v1315, %v1404
        %v1406 = vpop.f32.mrb[0].mxu0
        %1407 = vmatprep.mubr.f32.mxu0 0.0
        %v1408 = vand.u32 %v837, 4294901760
        %1409 = vmatmul.mubr.f32.gmra.mrb[0].mxu0 %v1408
        %v1410 = vpop.f32.mrb[0].mxu0
        %v1411 = vadd.f32 %v1321, %v1410
        %v1412 = vpop.f32.mrb[0].mxu0
        %1413 = vdwg.mxu0
        %v1414 = vsub.f32 %v802, %v1393
        %v1415 = vsub.f32 %v808, %v1399
        %v1416 = vsub.f32 %v814, %v1405
        %v1417 = vsub.f32 %v820, %v1411
        %v1418 = vmul.f32 %v1414, %v1414
        %v1419 = vmul.f32 %v1415, %v1415
        %v1420 = vmul.f32 %v1416, %v1416
        %v1421 = vmul.f32 %v1417, %v1417
        %v1422 = vadd.f32 %v1418, %v1419
        %v1423 = vadd.f32 %v1422, %v1420
        %v1424 = vadd.f32 %v1423, %v1421
        %v1425 = vrot.slane %v1424, 4
        %v1426 = vadd.f32 %v1424, %v1425
        %v1427 = vrot.slane %v1426, 2
        %v1428 = vadd.f32 %v1426, %v1427
        %v1429 = vrot.slane %v1428, 1
        %v1430 = vadd.f32 %v1428, %v1429
        %v1431 = vmax.f32 %v1430, 1e-30
        %v1432 = vlog2.pop %v1431
        %v1433 = vmul.f32 %v1432, 0.6931472
        %v1434 = vstv %s204
        %v1435 = vmul.f32 %v1434, %v1433
        %v1436 = vmul.f32 %v1435, 1.442695
        %v1437 = vpow.pop %v1436
        %vm1438 = vcmp.gt.f32.partialorder %v1430, 0.0
        %v1439 = vsel %vm1438, %v1437, 0.0
        %v1440 = vstv %s203
        %v1441 = vmul.f32 %v1440, %v1439
        %v1442 = vstv %s205
        %vm1443 = vcmp.lt.s32.totalorder %v212, %v1442
        %v1444 = vsel %vm1443, 1, 0
        %v1445 = vcvt.s32.f32 %v1444
        %v1446 = vstv %s206
        %vm1447 = vcmp.lt.s32.totalorder %v212, %v1446
        %v1448 = vsel %vm1447, 1, 0
        %v1449 = vcvt.s32.f32 %v1448
        %v1450 = vadd.f32 %v1441, 2.0
        %v1451 = vlog2.pop %v1450
        %v1452 = vmul.f32 %v1451, 0.6931472
        %v1453 = vsub.f32 1.0, %v1445
        %v1454 = vadd.f32 %v1441, 1.0
        %v1455 = vlog2.pop %v1454
        %v1456 = vmul.f32 %v1455, 0.6931472
        %v1457 = vmul.f32 -0.5, %v1441
        %v1458 = vadd.f32 %v1457, 1.0
        %v1459 = vmul.f32 %v1458, %v1441
        %v1460 = vand.u32 2147483647, %v1441
        %vm1461 = vcmp.lt.f32.partialorder %v1460, 0.0004427343
        %v1462 = vsel %vm1461, %v1459, %v1456
        %v1463 = vmul.f32 %v1453, %v1462
        %v1464 = vsub.f32 %v1452, %v1463
        %v1465 = vmul.f32 %v1464, %v1449
        %v1466 = vld [vmem:[#allocation2] sm:$0x1]
        %1467 = vadd.xlane.f32.xlu0 %v1465
        %v1468 = vpop.xlane.xlu0 %1467
        %v1469 = vadd.f32 %v1466, %v1468
        %vm1470 = vcmask 0
        %1471 = vst.msk [vmem:[#allocation2] sm:$0x1] %vm1470, %v1469
        // Predicated region
        $region37: #{tpu_custom_call.1} parent=31 // pred_check
          %p1472 = pneg %p197
        $region38: #{tpu_custom_call.1} parent=31 // pred_check_branch
          %1474 = sbr.rel (%p1472) target = $region40
        $region39: #{tpu_custom_call.1} parent=31 // pred_region
          %v1475 = vld [vmem:[#allocation2] sm:$0x1]
          %v1477 = vlaneseq
          %v1478 = vshrl.u32 %v1477, 7
          %v1479 = vsub.s32 0, %v1478
          %v1480 = vrot.slane %v1475, %v1479
          %1481 = vset.pattern.permute.xlu0 0
          %1482 = vperm.xlu0 %1481, %v1480
          %v1483 = vpop.permute.xlu0 %1482
          %1485 = vst [vmem:[%s190] sm:$0xff] %v1483
        $region40: #{tpu_custom_call.1} parent=31 // pred_fallthru
          _
        %s1486 = sand.u32 %s119, 1
        %s1487 = scalar_lea.sflag [#allocation7], %s1486
        %s1488 = sand.u32 %s119, 1
        %s1489 = smul.addr %s1488, 8
        %s1490 = scalar_lea.vmem [#allocation6], %s1489
        // Predicated region
        $region41: #{tpu_custom_call.1} parent=31 // pred_check
          %p1491 = pneg %p129
        $region42: #{tpu_custom_call.1} parent=31 // pred_check_branch
          %1493 = sbr.rel (%p1491) target = $region44
        $region43: #{tpu_custom_call.1} parent=31 // pred_region
          %s1495 = ssub.s32 128, 128
          %1496 = vsyncadd %s1487, %s1495
          %s1497 = smul.addr %s33, 128
          %s1498 = scalar_lea.hbm %s5, %s1497
          %s1500 = sshll.u32 %s1490, 4
          %s1501 = int_to_ptr.vmem [resolvable:$true] %s1500
          %1503 = dma.vmem_to_hbm [thread:$0]  %s1501, 128, %s1498, %s1487
        $region44: #{tpu_custom_call.1} parent=31 // pred_fallthru
          _
      $region32: #{tpu_custom_call.1} parent=5 // pred_fallthru
        _
      %p1504 = scmp.le.s32.totalorder 2, %s24
      // Predicated region
      $region45: #{tpu_custom_call.1} parent=5 // pred_check
        %p1505 = pneg %p1504
      $region46: #{tpu_custom_call.1} parent=5 // pred_check_branch
        %1507 = sbr.rel (%p1505) target = $region48
      $region47: #{tpu_custom_call.1} parent=5 // pred_region
        %s1508 = ssub.s32 %s24, 2
        // Predicated region
        $region49: #{tpu_custom_call.1} parent=47 // pred_check
          %p1509 = pneg %p135
        $region50: #{tpu_custom_call.1} parent=47 // pred_check_branch
          %1511 = sbr.rel (%p1509) target = $region52
        $region51: #{tpu_custom_call.1} parent=47 // pred_region
          %s1512 = sand.u32 %s120, 1
          %s1513 = scalar_lea.sflag [#allocation7], %s1512
          %s1514 = sand.u32 %s120, 1
          %s1515 = smul.addr %s1514, 8
          %s1516 = scalar_lea.vmem [#allocation6], %s1515
          %1517 = dma.done %s1513, 128
        $region52: #{tpu_custom_call.1} parent=47 // pred_fallthru
          _
      $region48: #{tpu_custom_call.1} parent=5 // pred_fallthru
        _
    $region6: #{tpu_custom_call.1} parent=1 // loop_footer
      %s28 = sadd.s32 1, %s24
    $region7: #{tpu_custom_call.1} parent=1 // loop_footer_branch
      %23 = sbr.rel target = $region3
    $region8: #{tpu_custom_call.1} parent=1 // loop_exit
      _
    %1518 = vsyncpa [#allocation7], 1
    %s1519 = scalar_lea.sflag [#allocation7], 1
    %1520 = vsyncpa %s1519, 1

</llo_original>
